<compile_context>
chip_gen: v7x
topology: tpu7x:2x2x1
jax: 0.10.0
libtpu: 0.0.40
codegen_flags: <defaults>
</compile_context>

<pallas_src>
import math

import jax
import jax.numpy as jnp
from jax.experimental import pallas as pl
from jax.experimental.pallas import tpu as pltpu


# ----------------------------- configuration --------------------------------
B = 2            # batch
S = 8            # sequence length
H = 32           # hidden size
NH = 4           # num attention heads
HD = H // NH     # attention head size
LN_EPS = 1e-12   # BERT layer_norm_eps
SCALE = 1.0 / math.sqrt(HD)


# ------------------------------- kernel --------------------------------------
def bert_attention_kernel(
    x_ref,        # (B*S, H)   all hidden-state rows
    mask_ref,     # (B, S)     additive attention mask
    wqkv_ref,     # (H, 3H)    fused, pre-transposed Q/K/V weight (in, out)
    bqkv_ref,     # (1, 3H)    fused Q/K/V bias
    wo_ref,       # (H, H)     pre-transposed output-dense weight (in, out)
    bo_ref,       # (1, H)
    gamma_ref,    # (1, H)     LayerNorm weight
    beta_ref,     # (1, H)     LayerNorm bias
    out_ref,      # (B*S, H)   attention_output rows
    probs_ref,    # (B, NH, S, S) attention_probs
):
    x = x_ref[...]                                            # (B*S, H)

    # Fused Q/K/V projection: single MXU matmul over all batch*seq rows.
    qkv = jnp.dot(x, wqkv_ref[...], preferred_element_type=jnp.float32) + bqkv_ref[...]
    q = (qkv[:, 0 * H:1 * H] * SCALE).reshape(B, S, H)        # scale folded into Q once
    k = qkv[:, 1 * H:2 * H].reshape(B, S, H)
    v = qkv[:, 2 * H:3 * H].reshape(B, S, H)

    # Additive mask broadcast, hoisted out of the head loop: (B, 1, S).
    mask_b = mask_ref[...].reshape(B, 1, S)

    probs_parts = []
    ctx_parts = []
    for h in range(NH):                                       # static loop, NH small
        lo = h * HD
        qh = q[:, :, lo:lo + HD]                              # (B, S, HD)
        kh = k[:, :, lo:lo + HD]
        vh = v[:, :, lo:lo + HD]

        # Batched over B in one contraction: (B, S, S).
        scores = jnp.einsum("bqd,bkd->bqk", qh, kh,
                            preferred_element_type=jnp.float32)
        scores = scores + mask_b

        # Softmax over the key axis.
        m = jnp.max(scores, axis=-1, keepdims=True)
        e = jnp.exp(scores - m)
        denom = jnp.sum(e, axis=-1, keepdims=True)
        probs = e * pl.reciprocal(denom, approx=True)         # EUP slot, free-ish

        # TODO(synk): attention-probs dropout / head_mask omitted (eval mode, head_mask=None).
        probs_parts.append(probs)

        # Context for this head, batched over B: (B, S, HD).
        ctx_parts.append(
            jnp.einsum("bqk,bkd->bqd", probs, vh,
                       preferred_element_type=jnp.float32)
        )

    # Single store for attention_probs (one write instead of NH sub-stores).
    probs_ref[...] = jnp.stack(probs_parts, axis=1)           # (B, NH, S, S)

    # Re-assemble heads -> (B*S, H) rows.
    context = jnp.concatenate(ctx_parts, axis=-1).reshape(B * S, H)

    # Output dense projection (weight already (in, out)).
    dense = jnp.dot(context, wo_ref[...], preferred_element_type=jnp.float32) + bo_ref[...]
    # TODO(synk): hidden-state dropout omitted (eval mode).

    # Residual + LayerNorm over the hidden axis.
    pre = dense + x
    mean = jnp.mean(pre, axis=-1, keepdims=True)
    centered = pre - mean
    var = jnp.mean(centered * centered, axis=-1, keepdims=True)
    inv_std = jax.lax.rsqrt(var + LN_EPS)
    out_ref[...] = centered * inv_std * gamma_ref[...] + beta_ref[...]


# ------------------------------- wrapper --------------------------------------
@jax.jit
def bert_attention(x, attn_mask, params):
    """x: (B, S, H) f32; attn_mask: (B, S) additive f32 mask.

    Returns (attention_output (B, S, H), attention_probs (B, NH, S, S)).
    """
    wq, bq, wk, bk, wv, bv, wo, bo, gamma, beta = params

    # One-time layout work outside the kernel: fuse + pre-transpose QKV, transpose O.
    wqkv = jnp.concatenate([wq.T, wk.T, wv.T], axis=1)        # (H, 3H)   (in, out)
    bqkv = jnp.concatenate([bq, bk, bv], axis=1)              # (1, 3H)
    wo_t = wo.T                                               # (H, H)    (in, out)

    x2d = x.reshape(B * S, H)

    # No grid: whole problem is one body; every operand is a single full-array
    # VMEM block (default BlockSpec), so there is no per-step pipeline overhead.
    out2d, probs = pl.pallas_call(
        bert_attention_kernel,
        out_shape=(
            jax.ShapeDtypeStruct((B * S, H), jnp.float32),
            jax.ShapeDtypeStruct((B, NH, S, S), jnp.float32),
        ),
    )(x2d, attn_mask, wqkv, bqkv, wo_t, bo, gamma, beta)

    return out2d.reshape(B, S, H), probs


def init_params(key):
    ks = jax.random.split(key, 4)
    scale = 0.02
    wq = scale * jax.random.normal(ks[0], (H, H), jnp.float32)
    bq = jnp.zeros((1, H), jnp.float32)
    wk = scale * jax.random.normal(ks[1], (H, H), jnp.float32)
    bk = jnp.zeros((1, H), jnp.float32)
    wv = scale * jax.random.normal(ks[2], (H, H), jnp.float32)
    bv = jnp.zeros((1, H), jnp.float32)
    wo = scale * jax.random.normal(ks[3], (H, H), jnp.float32)
    bo = jnp.zeros((1, H), jnp.float32)
    gamma = jnp.ones((1, H), jnp.float32)
    beta = jnp.zeros((1, H), jnp.float32)
    return (wq, bq, wk, bk, wv, bv, wo, bo, gamma, beta)


# pure-JAX reference for a sanity check
def reference(x, attn_mask, params):
    wq, bq, wk, bk, wv, bv, wo, bo, gamma, beta = params
    q = x @ wq.T + bq[0]
    k = x @ wk.T + bk[0]
    v = x @ wv.T + bv[0]
    split = lambda t: t.reshape(B, S, NH, HD).transpose(0, 2, 1, 3)   # (B, NH, S, HD)
    qh, kh, vh = split(q), split(k), split(v)
    scores = jnp.einsum("bhqd,bhkd->bhqk", qh, kh) / math.sqrt(HD)
    scores = scores + attn_mask[:, None, None, :]
    probs = jax.nn.softmax(scores, axis=-1)
    ctx = jnp.einsum("bhqk,bhkd->bhqd", probs, vh)
    ctx = ctx.transpose(0, 2, 1, 3).reshape(B, S, H)
    dense = ctx @ wo.T + bo[0]
    pre = dense + x
    mean = pre.mean(-1, keepdims=True)
    var = ((pre - mean) ** 2).mean(-1, keepdims=True)
    out = (pre - mean) / jnp.sqrt(var + LN_EPS) * gamma[0] + beta[0]
    return out, probs


if __name__ == "__main__":
    key = jax.random.PRNGKey(0)
    k_x, k_m, k_p = jax.random.split(key, 3)

    x = jax.random.normal(k_x, (B, S, H), jnp.float32)
    # additive mask: 0 for visible tokens, -10000 for masked (last 2 tokens of batch 1)
    mask = jnp.zeros((B, S), jnp.float32)
    mask = mask.at[1, -2:].set(-10000.0)

    params = init_params(k_p)

    out, probs = bert_attention(x, mask, params)
    out, probs = jax.block_until_ready((out, probs))

    ref_out, ref_probs = reference(x, mask, params)
    # slightly loose tolerance for the approximate (EUP) softmax reciprocal
    assert jnp.allclose(out, ref_out, atol=5e-3, rtol=1e-3)
    assert jnp.allclose(probs, ref_probs, atol=5e-3, rtol=1e-3)

    print("KERNEL_OK")
</pallas_src>

<mosaic_0001>
module attributes {stable_mosaic.version = 11 : i64} {
  func.func @bert_attention_kernel(%arg0: memref<16x32xf32, #tpu.memory_space<vmem>>, %arg1: memref<2x8xf32, #tpu.memory_space<vmem>>, %arg2: memref<32x96xf32, #tpu.memory_space<vmem>>, %arg3: memref<1x96xf32, #tpu.memory_space<vmem>>, %arg4: memref<32x32xf32, #tpu.memory_space<vmem>>, %arg5: memref<1x32xf32, #tpu.memory_space<vmem>>, %arg6: memref<1x32xf32, #tpu.memory_space<vmem>>, %arg7: memref<1x32xf32, #tpu.memory_space<vmem>>, %arg8: memref<16x32xf32, #tpu.memory_space<vmem>>, %arg9: memref<2x4x8x8xf32, #tpu.memory_space<vmem>>) attributes {dimension_semantics = [], scalar_prefetch = 0 : i64, scratch_operands = 0 : i64, tpu.core_type = #tpu.core_type<tc>} {
    %c0 = arith.constant 0 : index
    %c0_0 = arith.constant 0 : index
    %0 = vector.load %arg0[%c0, %c0_0] : memref<16x32xf32, #tpu.memory_space<vmem>>, vector<16x32xf32>
    %c0_1 = arith.constant 0 : index
    %c0_2 = arith.constant 0 : index
    %1 = vector.load %arg2[%c0_1, %c0_2] : memref<32x96xf32, #tpu.memory_space<vmem>>, vector<32x96xf32>
    %cst = arith.constant dense<0.000000e+00> : vector<16x96xf32>
    %2 = tpu.matmul %0, %1, %cst {dimension_numbers = #tpu.dot_dimension_numbers<[1], [0], [0], [1], [0, 0, 1, 1], [], []>} : vector<16x32xf32>, vector<32x96xf32>, vector<16x96xf32> -> vector<16x96xf32>
    %c0_3 = arith.constant 0 : index
    %c0_4 = arith.constant 0 : index
    %3 = vector.load %arg3[%c0_3, %c0_4] : memref<1x96xf32, #tpu.memory_space<vmem>>, vector<1x96xf32>
    %4 = vector.broadcast %3 : vector<1x96xf32> to vector<16x96xf32>
    %5 = arith.addf %2, %4 : vector<16x96xf32>
    %6 = vector.extract_strided_slice %5 {offsets = [0, 0], sizes = [16, 32], strides = [1, 1]} : vector<16x96xf32> to vector<16x32xf32>
    %cst_5 = arith.constant 0.353553385 : f32
    %7 = vector.broadcast %cst_5 : f32 to vector<16x32xf32>
    %8 = arith.mulf %6, %7 : vector<16x32xf32>
    %9 = vector.shape_cast %8 : vector<16x32xf32> to vector<2x8x32xf32>
    %10 = vector.extract_strided_slice %5 {offsets = [0, 32], sizes = [16, 32], strides = [1, 1]} : vector<16x96xf32> to vector<16x32xf32>
    %11 = vector.shape_cast %10 : vector<16x32xf32> to vector<2x8x32xf32>
    %12 = vector.extract_strided_slice %5 {offsets = [0, 64], sizes = [16, 32], strides = [1, 1]} : vector<16x96xf32> to vector<16x32xf32>
    %13 = vector.shape_cast %12 : vector<16x32xf32> to vector<2x8x32xf32>
    %c0_6 = arith.constant 0 : index
    %c0_7 = arith.constant 0 : index
    %14 = vector.load %arg1[%c0_6, %c0_7] : memref<2x8xf32, #tpu.memory_space<vmem>>, vector<2x8xf32>
    %15 = vector.shape_cast %14 : vector<2x8xf32> to vector<2x1x8xf32>
    %16 = vector.extract_strided_slice %9 {offsets = [0, 0, 0], sizes = [2, 8, 8], strides = [1, 1, 1]} : vector<2x8x32xf32> to vector<2x8x8xf32>
    %17 = vector.extract_strided_slice %11 {offsets = [0, 0, 0], sizes = [2, 8, 8], strides = [1, 1, 1]} : vector<2x8x32xf32> to vector<2x8x8xf32>
    %18 = vector.extract_strided_slice %13 {offsets = [0, 0, 0], sizes = [2, 8, 8], strides = [1, 1, 1]} : vector<2x8x32xf32> to vector<2x8x8xf32>
    "tpu.trace_start"() <{level = 10 : i32, message = "bqd,bkd->bqk"}> : () -> ()
    %cst_8 = arith.constant dense<0.000000e+00> : vector<2x8x8xf32>
    %19 = tpu.matmul %16, %17, %cst_8 {dimension_numbers = #tpu.dot_dimension_numbers<[2], [2], [1], [1], [0, 0, 0, 1, 1, 1], [0], [0]>} : vector<2x8x8xf32>, vector<2x8x8xf32>, vector<2x8x8xf32> -> vector<2x8x8xf32>
    "tpu.trace_stop"() : () -> ()
    %20 = vector.broadcast %15 : vector<2x1x8xf32> to vector<2x8x8xf32>
    %21 = arith.addf %19, %20 : vector<2x8x8xf32>
    %cst_9 = arith.constant dense<0xFF800000> : vector<2x8xf32>
    %22 = vector.multi_reduction <maximumf>, %21, %cst_9 [2] : vector<2x8x8xf32> to vector<2x8xf32>
    %23 = vector.shape_cast %22 : vector<2x8xf32> to vector<2x8x1xf32>
    %24 = vector.broadcast %23 : vector<2x8x1xf32> to vector<2x8x8xf32>
    %25 = arith.subf %21, %24 : vector<2x8x8xf32>
    %26 = math.exp %25 : vector<2x8x8xf32>
    %cst_10 = arith.constant dense<0.000000e+00> : vector<2x8xf32>
    %27 = vector.multi_reduction <add>, %26, %cst_10 [2] : vector<2x8x8xf32> to vector<2x8xf32>
    %28 = vector.shape_cast %27 : vector<2x8xf32> to vector<2x8x1xf32>
    %29 = tpu.reciprocal %28 {approx = true} : vector<2x8x1xf32> -> vector<2x8x1xf32>
    %30 = vector.broadcast %29 : vector<2x8x1xf32> to vector<2x8x8xf32>
    %31 = arith.mulf %26, %30 : vector<2x8x8xf32>
    "tpu.trace_start"() <{level = 10 : i32, message = "bqk,bkd->bqd"}> : () -> ()
    %cst_11 = arith.constant dense<0.000000e+00> : vector<2x8x8xf32>
    %32 = tpu.matmul %31, %18, %cst_11 {dimension_numbers = #tpu.dot_dimension_numbers<[2], [1], [1], [2], [0, 0, 0, 1, 1, 2], [0], [0]>} : vector<2x8x8xf32>, vector<2x8x8xf32>, vector<2x8x8xf32> -> vector<2x8x8xf32>
    "tpu.trace_stop"() : () -> ()
    %33 = vector.extract_strided_slice %9 {offsets = [0, 0, 8], sizes = [2, 8, 8], strides = [1, 1, 1]} : vector<2x8x32xf32> to vector<2x8x8xf32>
    %34 = vector.extract_strided_slice %11 {offsets = [0, 0, 8], sizes = [2, 8, 8], strides = [1, 1, 1]} : vector<2x8x32xf32> to vector<2x8x8xf32>
    %35 = vector.extract_strided_slice %13 {offsets = [0, 0, 8], sizes = [2, 8, 8], strides = [1, 1, 1]} : vector<2x8x32xf32> to vector<2x8x8xf32>
    "tpu.trace_start"() <{level = 10 : i32, message = "bqd,bkd->bqk"}> : () -> ()
    %cst_12 = arith.constant dense<0.000000e+00> : vector<2x8x8xf32>
    %36 = tpu.matmul %33, %34, %cst_12 {dimension_numbers = #tpu.dot_dimension_numbers<[2], [2], [1], [1], [0, 0, 0, 1, 1, 1], [0], [0]>} : vector<2x8x8xf32>, vector<2x8x8xf32>, vector<2x8x8xf32> -> vector<2x8x8xf32>
    "tpu.trace_stop"() : () -> ()
    %37 = vector.broadcast %15 : vector<2x1x8xf32> to vector<2x8x8xf32>
    %38 = arith.addf %36, %37 : vector<2x8x8xf32>
    %cst_13 = arith.constant dense<0xFF800000> : vector<2x8xf32>
    %39 = vector.multi_reduction <maximumf>, %38, %cst_13 [2] : vector<2x8x8xf32> to vector<2x8xf32>
    %40 = vector.shape_cast %39 : vector<2x8xf32> to vector<2x8x1xf32>
    %41 = vector.broadcast %40 : vector<2x8x1xf32> to vector<2x8x8xf32>
    %42 = arith.subf %38, %41 : vector<2x8x8xf32>
    %43 = math.exp %42 : vector<2x8x8xf32>
    %cst_14 = arith.constant dense<0.000000e+00> : vector<2x8xf32>
    %44 = vector.multi_reduction <add>, %43, %cst_14 [2] : vector<2x8x8xf32> to vector<2x8xf32>
    %45 = vector.shape_cast %44 : vector<2x8xf32> to vector<2x8x1xf32>
    %46 = tpu.reciprocal %45 {approx = true} : vector<2x8x1xf32> -> vector<2x8x1xf32>
    %47 = vector.broadcast %46 : vector<2x8x1xf32> to vector<2x8x8xf32>
    %48 = arith.mulf %43, %47 : vector<2x8x8xf32>
    "tpu.trace_start"() <{level = 10 : i32, message = "bqk,bkd->bqd"}> : () -> ()
    %cst_15 = arith.constant dense<0.000000e+00> : vector<2x8x8xf32>
    %49 = tpu.matmul %48, %35, %cst_15 {dimension_numbers = #tpu.dot_dimension_numbers<[2], [1], [1], [2], [0, 0, 0, 1, 1, 2], [0], [0]>} : vector<2x8x8xf32>, vector<2x8x8xf32>, vector<2x8x8xf32> -> vector<2x8x8xf32>
    "tpu.trace_stop"() : () -> ()
    %50 = vector.extract_strided_slice %9 {offsets = [0, 0, 16], sizes = [2, 8, 8], strides = [1, 1, 1]} : vector<2x8x32xf32> to vector<2x8x8xf32>
    %51 = vector.extract_strided_slice %11 {offsets = [0, 0, 16], sizes = [2, 8, 8], strides = [1, 1, 1]} : vector<2x8x32xf32> to vector<2x8x8xf32>
    %52 = vector.extract_strided_slice %13 {offsets = [0, 0, 16], sizes = [2, 8, 8], strides = [1, 1, 1]} : vector<2x8x32xf32> to vector<2x8x8xf32>
    "tpu.trace_start"() <{level = 10 : i32, message = "bqd,bkd->bqk"}> : () -> ()
    %cst_16 = arith.constant dense<0.000000e+00> : vector<2x8x8xf32>
    %53 = tpu.matmul %50, %51, %cst_16 {dimension_numbers = #tpu.dot_dimension_numbers<[2], [2], [1], [1], [0, 0, 0, 1, 1, 1], [0], [0]>} : vector<2x8x8xf32>, vector<2x8x8xf32>, vector<2x8x8xf32> -> vector<2x8x8xf32>
    "tpu.trace_stop"() : () -> ()
    %54 = vector.broadcast %15 : vector<2x1x8xf32> to vector<2x8x8xf32>
    %55 = arith.addf %53, %54 : vector<2x8x8xf32>
    %cst_17 = arith.constant dense<0xFF800000> : vector<2x8xf32>
    %56 = vector.multi_reduction <maximumf>, %55, %cst_17 [2] : vector<2x8x8xf32> to vector<2x8xf32>
    %57 = vector.shape_cast %56 : vector<2x8xf32> to vector<2x8x1xf32>
    %58 = vector.broadcast %57 : vector<2x8x1xf32> to vector<2x8x8xf32>
    %59 = arith.subf %55, %58 : vector<2x8x8xf32>
    %60 = math.exp %59 : vector<2x8x8xf32>
    %cst_18 = arith.constant dense<0.000000e+00> : vector<2x8xf32>
    %61 = vector.multi_reduction <add>, %60, %cst_18 [2] : vector<2x8x8xf32> to vector<2x8xf32>
    %62 = vector.shape_cast %61 : vector<2x8xf32> to vector<2x8x1xf32>
    %63 = tpu.reciprocal %62 {approx = true} : vector<2x8x1xf32> -> vector<2x8x1xf32>
    %64 = vector.broadcast %63 : vector<2x8x1xf32> to vector<2x8x8xf32>
    %65 = arith.mulf %60, %64 : vector<2x8x8xf32>
    "tpu.trace_start"() <{level = 10 : i32, message = "bqk,bkd->bqd"}> : () -> ()
    %cst_19 = arith.constant dense<0.000000e+00> : vector<2x8x8xf32>
    %66 = tpu.matmul %65, %52, %cst_19 {dimension_numbers = #tpu.dot_dimension_numbers<[2], [1], [1], [2], [0, 0, 0, 1, 1, 2], [0], [0]>} : vector<2x8x8xf32>, vector<2x8x8xf32>, vector<2x8x8xf32> -> vector<2x8x8xf32>
    "tpu.trace_stop"() : () -> ()
    %67 = vector.extract_strided_slice %9 {offsets = [0, 0, 24], sizes = [2, 8, 8], strides = [1, 1, 1]} : vector<2x8x32xf32> to vector<2x8x8xf32>
    %68 = vector.extract_strided_slice %11 {offsets = [0, 0, 24], sizes = [2, 8, 8], strides = [1, 1, 1]} : vector<2x8x32xf32> to vector<2x8x8xf32>
    %69 = vector.extract_strided_slice %13 {offsets = [0, 0, 24], sizes = [2, 8, 8], strides = [1, 1, 1]} : vector<2x8x32xf32> to vector<2x8x8xf32>
    "tpu.trace_start"() <{level = 10 : i32, message = "bqd,bkd->bqk"}> : () -> ()
    %cst_20 = arith.constant dense<0.000000e+00> : vector<2x8x8xf32>
    %70 = tpu.matmul %67, %68, %cst_20 {dimension_numbers = #tpu.dot_dimension_numbers<[2], [2], [1], [1], [0, 0, 0, 1, 1, 1], [0], [0]>} : vector<2x8x8xf32>, vector<2x8x8xf32>, vector<2x8x8xf32> -> vector<2x8x8xf32>
    "tpu.trace_stop"() : () -> ()
    %71 = vector.broadcast %15 : vector<2x1x8xf32> to vector<2x8x8xf32>
    %72 = arith.addf %70, %71 : vector<2x8x8xf32>
    %cst_21 = arith.constant dense<0xFF800000> : vector<2x8xf32>
    %73 = vector.multi_reduction <maximumf>, %72, %cst_21 [2] : vector<2x8x8xf32> to vector<2x8xf32>
    %74 = vector.shape_cast %73 : vector<2x8xf32> to vector<2x8x1xf32>
    %75 = vector.broadcast %74 : vector<2x8x1xf32> to vector<2x8x8xf32>
    %76 = arith.subf %72, %75 : vector<2x8x8xf32>
    %77 = math.exp %76 : vector<2x8x8xf32>
    %cst_22 = arith.constant dense<0.000000e+00> : vector<2x8xf32>
    %78 = vector.multi_reduction <add>, %77, %cst_22 [2] : vector<2x8x8xf32> to vector<2x8xf32>
    %79 = vector.shape_cast %78 : vector<2x8xf32> to vector<2x8x1xf32>
    %80 = tpu.reciprocal %79 {approx = true} : vector<2x8x1xf32> -> vector<2x8x1xf32>
    %81 = vector.broadcast %80 : vector<2x8x1xf32> to vector<2x8x8xf32>
    %82 = arith.mulf %77, %81 : vector<2x8x8xf32>
    "tpu.trace_start"() <{level = 10 : i32, message = "bqk,bkd->bqd"}> : () -> ()
    %cst_23 = arith.constant dense<0.000000e+00> : vector<2x8x8xf32>
    %83 = tpu.matmul %82, %69, %cst_23 {dimension_numbers = #tpu.dot_dimension_numbers<[2], [1], [1], [2], [0, 0, 0, 1, 1, 2], [0], [0]>} : vector<2x8x8xf32>, vector<2x8x8xf32>, vector<2x8x8xf32> -> vector<2x8x8xf32>
    "tpu.trace_stop"() : () -> ()
    %84 = vector.shape_cast %31 : vector<2x8x8xf32> to vector<2x1x8x8xf32>
    %85 = vector.shape_cast %48 : vector<2x8x8xf32> to vector<2x1x8x8xf32>
    %86 = vector.shape_cast %65 : vector<2x8x8xf32> to vector<2x1x8x8xf32>
    %87 = vector.shape_cast %82 : vector<2x8x8xf32> to vector<2x1x8x8xf32>
    %88 = tpu.concatenate %84, %85, %86, %87 in 1 : vector<2x1x8x8xf32>, vector<2x1x8x8xf32>, vector<2x1x8x8xf32>, vector<2x1x8x8xf32> -> vector<2x4x8x8xf32>
    %c0_24 = arith.constant 0 : index
    %c0_25 = arith.constant 0 : index
    %c0_26 = arith.constant 0 : index
    %c0_27 = arith.constant 0 : index
    %89 = vector.load %arg9[%c0_24, %c0_25, %c0_26, %c0_27] : memref<2x4x8x8xf32, #tpu.memory_space<vmem>>, vector<2x4x8x8xf32>
    tpu.vector_store %arg9[%c0_24, %c0_25, %c0_26, %c0_27], %88 {strides = array<i32>} : memref<2x4x8x8xf32, #tpu.memory_space<vmem>>, vector<2x4x8x8xf32>,
    %90 = tpu.concatenate %32, %49, %66, %83 in 2 : vector<2x8x8xf32>, vector<2x8x8xf32>, vector<2x8x8xf32>, vector<2x8x8xf32> -> vector<2x8x32xf32>
    %91 = vector.shape_cast %90 : vector<2x8x32xf32> to vector<16x32xf32>
    %c0_28 = arith.constant 0 : index
    %c0_29 = arith.constant 0 : index
    %92 = vector.load %arg4[%c0_28, %c0_29] : memref<32x32xf32, #tpu.memory_space<vmem>>, vector<32x32xf32>
    %cst_30 = arith.constant dense<0.000000e+00> : vector<16x32xf32>
    %93 = tpu.matmul %91, %92, %cst_30 {dimension_numbers = #tpu.dot_dimension_numbers<[1], [0], [0], [1], [0, 0, 1, 1], [], []>} : vector<16x32xf32>, vector<32x32xf32>, vector<16x32xf32> -> vector<16x32xf32>
    %c0_31 = arith.constant 0 : index
    %c0_32 = arith.constant 0 : index
    %94 = vector.load %arg5[%c0_31, %c0_32] : memref<1x32xf32, #tpu.memory_space<vmem>>, vector<1x32xf32>
    %95 = vector.broadcast %94 : vector<1x32xf32> to vector<16x32xf32>
    %96 = arith.addf %93, %95 : vector<16x32xf32>
    %97 = arith.addf %96, %0 : vector<16x32xf32>
    %cst_33 = arith.constant dense<0.000000e+00> : vector<16xf32>
    %98 = vector.multi_reduction <add>, %97, %cst_33 [1] : vector<16x32xf32> to vector<16xf32>
    %99 = vector.shape_cast %98 : vector<16xf32> to vector<16x1xf32>
    %cst_34 = arith.constant 3.200000e+01 : f32
    %100 = vector.broadcast %cst_34 : f32 to vector<16x1xf32>
    %101 = arith.divf %99, %100 : vector<16x1xf32>
    %102 = vector.broadcast %101 : vector<16x1xf32> to vector<16x32xf32>
    %103 = arith.subf %97, %102 : vector<16x32xf32>
    %104 = arith.mulf %103, %103 : vector<16x32xf32>
    %cst_35 = arith.constant dense<0.000000e+00> : vector<16xf32>
    %105 = vector.multi_reduction <add>, %104, %cst_35 [1] : vector<16x32xf32> to vector<16xf32>
    %106 = vector.shape_cast %105 : vector<16xf32> to vector<16x1xf32>
    %cst_36 = arith.constant 3.200000e+01 : f32
    %107 = vector.broadcast %cst_36 : f32 to vector<16x1xf32>
    %108 = arith.divf %106, %107 : vector<16x1xf32>
    %cst_37 = arith.constant 9.99999996E-13 : f32
    %109 = vector.broadcast %cst_37 : f32 to vector<16x1xf32>
    %110 = arith.addf %108, %109 : vector<16x1xf32>
    %111 = math.rsqrt %110 : vector<16x1xf32>
    %112 = vector.broadcast %111 : vector<16x1xf32> to vector<16x32xf32>
    %113 = arith.mulf %103, %112 : vector<16x32xf32>
    %c0_38 = arith.constant 0 : index
    %c0_39 = arith.constant 0 : index
    %114 = vector.load %arg6[%c0_38, %c0_39] : memref<1x32xf32, #tpu.memory_space<vmem>>, vector<1x32xf32>
    %115 = vector.broadcast %114 : vector<1x32xf32> to vector<16x32xf32>
    %116 = arith.mulf %113, %115 : vector<16x32xf32>
    %c0_40 = arith.constant 0 : index
    %c0_41 = arith.constant 0 : index
    %117 = vector.load %arg7[%c0_40, %c0_41] : memref<1x32xf32, #tpu.memory_space<vmem>>, vector<1x32xf32>
    %118 = vector.broadcast %117 : vector<1x32xf32> to vector<16x32xf32>
    %119 = arith.addf %116, %118 : vector<16x32xf32>
    %c0_42 = arith.constant 0 : index
    %c0_43 = arith.constant 0 : index
    %120 = vector.load %arg8[%c0_42, %c0_43] : memref<16x32xf32, #tpu.memory_space<vmem>>, vector<16x32xf32>
    tpu.vector_store %arg8[%c0_42, %c0_43], %119 {strides = array<i32>} : memref<16x32xf32, #tpu.memory_space<vmem>>, vector<16x32xf32>,
    return
  }
}

</mosaic_0001>

<llo_original>
// kernel: bert_attention.1
$region0: #{bert_attention.1}
  #allocation0 [shape = 'u32[]', space=smem, size = 0x4, offset = 0x4, fixed_abs, tag = 'smem constant byte address 0x4 - core index']
  #allocation1 [shape = 'u32[144,128]{1,0:T(1,128)}', space=vmem, size = 0x12000, scoped, tag = 'internal scratch']
  %s0 = inlined_call_operand.vmem [shape: f32[16,32], index: 0, kind: input, shape index: {}]
  %s1 = inlined_call_operand.vmem [shape: f32[2,8], index: 1, kind: input, shape index: {}]
  %s2 = inlined_call_operand.vmem [shape: f32[32,96], index: 2, kind: input, shape index: {}]
  %s3 = inlined_call_operand.vmem [shape: f32[1,96], index: 3, kind: input, shape index: {}]
  %s4 = inlined_call_operand.vmem [shape: f32[32,32], index: 4, kind: input, shape index: {}]
  %s5 = inlined_call_operand.vmem [shape: f32[1,32], index: 5, kind: input, shape index: {}]
  %s6 = inlined_call_operand.vmem [shape: f32[1,32], index: 6, kind: input, shape index: {}]
  %s7 = inlined_call_operand.vmem [shape: f32[1,32], index: 7, kind: input, shape index: {}]
  %s8 = inlined_call_operand.hbm [shape: f32[16,32], index: 8, kind: output, shape index: {0}]
  %s9 = inlined_call_operand.hbm [shape: f32[2,4,8,8], index: 9, kind: output, shape index: {1}]
  %10 = xla_tuple %s8, %s9
  %s11 = sld [smem:[#allocation0]]
  $region50: #{bert_attention.1} parent=0
    _
  %s13 = ssub.s32 1, %s11
  %s14 = scalar_select 0, %s13, %s11
  $region1: #{bert_attention.1} parent=0
    #allocation2 [shape = 'u8[8192]{0}', space=vmem, size = 0x2000, scoped, tag = 'output window, operand 0, single buffered']
    #allocation3 [shape = 's32[1]{0}', space=sflag, size = 0x4, scoped, tag = 'scoped memory for bert_attention.1']
    #allocation4 [shape = 'u8[32768]{0}', space=vmem, size = 0x8000, scoped, tag = 'output window, operand 1, single buffered']
    #allocation5 [shape = 's32[1]{0}', space=sflag, size = 0x4, scoped, tag = 'scoped memory for bert_attention.1']
    %15 = vsyncpa [#allocation3], 0
    %16 = vsyncpa [#allocation5], 0
    // Predicated region
    $region2: #{bert_attention.1} parent=1 // pred_check
      _
    $region3: #{bert_attention.1} parent=1 // pred_check_branch
      %18 = sbr.rel (0) target = $region5
    $region4: #{bert_attention.1} parent=1 // pred_region
      _
    $region5: #{bert_attention.1} parent=1 // pred_fallthru
      _
    // Predicated region
    $region6: #{bert_attention.1} parent=1 // pred_check
      _
    $region7: #{bert_attention.1} parent=1 // pred_check_branch
      %20 = sbr.rel (0) target = $region9
    $region8: #{bert_attention.1} parent=1 // pred_region
      _
    $region9: #{bert_attention.1} parent=1 // pred_fallthru
      _
    // Predicated region
    $region10: #{bert_attention.1} parent=1 // pred_check
      _
    $region11: #{bert_attention.1} parent=1 // pred_check_branch
      %22 = sbr.rel (0) target = $region13
    $region12: #{bert_attention.1} parent=1 // pred_region
      _
    $region13: #{bert_attention.1} parent=1 // pred_fallthru
      _
    // Predicated region
    $region14: #{bert_attention.1} parent=1 // pred_check
      _
    $region15: #{bert_attention.1} parent=1 // pred_check_branch
      %24 = sbr.rel (0) target = $region17
    $region16: #{bert_attention.1} parent=1 // pred_region
      _
    $region17: #{bert_attention.1} parent=1 // pred_fallthru
      _
    // Predicated region
    $region18: #{bert_attention.1} parent=1 // pred_check
      _
    $region19: #{bert_attention.1} parent=1 // pred_check_branch
      %26 = sbr.rel (0) target = $region21
    $region20: #{bert_attention.1} parent=1 // pred_region
      _
    $region21: #{bert_attention.1} parent=1 // pred_fallthru
      _
    // Predicated region
    $region22: #{bert_attention.1} parent=1 // pred_check
      _
    $region23: #{bert_attention.1} parent=1 // pred_check_branch
      %28 = sbr.rel (0) target = $region25
    $region24: #{bert_attention.1} parent=1 // pred_region
      _
    $region25: #{bert_attention.1} parent=1 // pred_fallthru
      _
    // Predicated region
    $region26: #{bert_attention.1} parent=1 // pred_check
      _
    $region27: #{bert_attention.1} parent=1 // pred_check_branch
      %30 = sbr.rel (0) target = $region29
    $region28: #{bert_attention.1} parent=1 // pred_region
      _
    $region29: #{bert_attention.1} parent=1 // pred_fallthru
      _
    // Predicated region
    $region30: #{bert_attention.1} parent=1 // pred_check
      _
    $region31: #{bert_attention.1} parent=1 // pred_check_branch
      %32 = sbr.rel (0) target = $region33
    $region32: #{bert_attention.1} parent=1 // pred_region
      _
    $region33: #{bert_attention.1} parent=1 // pred_fallthru
      _
    %v33 = vld [vmem:[%s0] sm:$0xff]
    %v34 = vld [vmem:[%s0 + $0x8] sm:$0xff]
    %v35 = vld [vmem:[%s2] sm:$0xff]
    %v36 = vld [vmem:[%s2 + $0x8] sm:$0xff]
    %v37 = vld [vmem:[%s2 + $0x10] sm:$0xff]
    %v38 = vld [vmem:[%s2 + $0x18] sm:$0xff]
    %v39 = vld [vmem:[%s3] sm:$0x1]
    %v41 = vlaneseq
    %v42 = vshrl.u32 %v41, 7
    %v43 = vsub.s32 0, %v42
    %v44 = vrot.slane %v39, %v43
    %vm46 = vcmask 261120
    %v48 = vsel %vm46, %v33, 0
    %v51 = vsel %vm46, %v34, 0
    %53 = vmatprep.subr.mxu0 0.0
    %54 = vmatpush1.msra.mxu0 %v35
    %55 = vmatprep.subr.mxu0 0.0
    %56 = vmatpush1.msra.mxu0 %v36
    %57 = vmatprep.subr.mxu0 0.0
    %58 = vmatpush1.msra.mxu0 %v37
    %59 = vmatprep.subr.mxu0 0.0
    %60 = vmatpush1.msra.mxu0 %v38
    %61 = vmatprep.subr.mxu0 0.0
    %62 = vmatpush1.msra.mxu0 0.0
    %63 = vmatprep.subr.mxu0 0.0
    %64 = vmatpush1.msra.mxu0 0.0
    %65 = vmatprep.subr.mxu0 0.0
    %66 = vmatpush1.msra.mxu0 0.0
    %67 = vmatprep.subr.mxu0 0.0
    %68 = vmatpush1.msra.mxu0 0.0
    %69 = vmatprep.subr.mxu0 0.0
    %70 = vmatpush1.msra.mxu0 0.0
    %71 = vmatprep.subr.mxu0 0.0
    %72 = vmatpush1.msra.mxu0 0.0
    %73 = vmatprep.subr.mxu0 0.0
    %74 = vmatpush1.msra.mxu0 0.0
    %75 = vmatprep.subr.mxu0 0.0
    %76 = vmatpush1.msra.mxu0 0.0
    %77 = vmatprep.subr.mxu0 0.0
    %78 = vmatpush1.msra.mxu0 0.0
    %79 = vmatprep.subr.mxu0 0.0
    %80 = vmatpush1.msra.mxu0 0.0
    %81 = vmatprep.subr.mxu0 0.0
    %82 = vmatpush1.msra.mxu0 0.0
    %83 = vmatprep.subr.mxu0 0.0
    %84 = vmatpush1.msra.mxu0 0.0
    %85 = vmatprep.subr.mxu0 0.0
    %86 = vmatpush1.msra.mxu0 0.0
    %87 = vmatprep.subr.mxu0 0.0
    %88 = vmatpush1.msra.mxu0 0.0
    %89 = vmatprep.subr.mxu0 0.0
    %90 = vmatpush1.msra.mxu0 0.0
    %91 = vmatprep.subr.mxu0 0.0
    %92 = vmatpush1.msra.mxu0 0.0
    %93 = vmatprep.subr.mxu0 0.0
    %94 = vmatpush1.msra.mxu0 0.0
    %95 = vmatprep.subr.mxu0 0.0
    %96 = vmatpush1.msra.mxu0 0.0
    %97 = vmatprep.subr.mxu0 0.0
    %98 = vmatpush1.msra.mxu0 0.0
    %99 = vmatprep.subr.mxu0 0.0
    %100 = vmatpush1.msra.mxu0 0.0
    %101 = vmatprep.subr.mxu0 0.0
    %102 = vmatpush1.msra.mxu0 0.0
    %103 = vmatprep.subr.mxu0 0.0
    %104 = vmatpush1.msra.mxu0 0.0
    %105 = vmatprep.subr.mxu0 0.0
    %106 = vmatpush1.msra.mxu0 0.0
    %107 = vmatprep.subr.mxu0 0.0
    %108 = vmatpush1.msra.mxu0 0.0
    %109 = vmatprep.subr.mxu0 0.0
    %110 = vmatpush1.msra.mxu0 0.0
    %111 = vmatprep.subr.mxu0 0.0
    %112 = vmatpush1.msra.mxu0 0.0
    %113 = vmatprep.subr.mxu0 0.0
    %114 = vmatpush1.msra.mxu0 0.0
    %115 = vmatprep.subr.mxu0 0.0
    %116 = vmatpush1.msra.mxu0 0.0
    %117 = vmatprep.mubr.f32.mxu0 0.0
    %118 = vmatmul.mubr.f32.gmra.mrb[0].mxu0 %v48
    %v119 = vpop.f32.mrb[0].mxu0
    %v120 = vadd.f32 %v44, %v119
    %v121 = vpop.f32.mrb[0].mxu0
    %122 = vmatprep.mubr.f32.mxu0 0.0
    %123 = vmatmul.mubr.f32.gmra.mrb[0].mxu0 %v51
    %v124 = vpop.f32.mrb[0].mxu0
    %v125 = vadd.f32 %v44, %v124
    %v126 = vpop.f32.mrb[0].mxu0
    %127 = vdwg.mxu0
    %v128 = vmul.f32 %v120, 0.35355338
    %v129 = vmul.f32 %v125, 0.35355338
    %v130 = vld [vmem:[%s1] sm:$0x3]
    %v133 = vunpack.c.l.s4 1966171168
    %v134 = vunpack.c.0.s8 %v133
    %v135 = vlaneseq
    %v136 = vshrl.u32 %v135, 7
    %v137 = vsub.s32 %v134, %v136
    %v138 = vrot.slane %v130, %v137
    %v139 = vcombine.high %v138, %v138
    %v141 = vunpack.c.l.s4 1966171168
    %v142 = vunpack.c.0.s8 %v141
    %v143 = vlaneseq
    %v144 = vshrl.u32 %v143, 7
    %v145 = vsub.s32 %v142, %v144
    %v146 = vrot.slane %v138, %v145
    %v148 = vunpack.c.l.s4 1966171168
    %v149 = vunpack.c.0.s8 %v148
    %v150 = vlaneseq
    %v151 = vshrl.u32 %v150, 7
    %v152 = vsub.s32 %v149, %v151
    %v153 = vrot.slane %v139, %v152
    %v154 = vlaneseq
    %v155 = vshrl.u32 %v154, 7
    %v156 = vsub.s32 0, %v155
    %v157 = vrot.slane %v146, %v156
    %v158 = vlaneseq
    %v159 = vshrl.u32 %v158, 7
    %v160 = vsub.s32 0, %v159
    %v161 = vrot.slane %v153, %v160
    %165 = vrot.lane.b32.xlu0 %v120, 96
    %v166 = vpop.permute.xlu0 %165
    %vm167 = vcmask 64512
    %v169 = vsel %vm167, %v128, 0
    %v171 = vsel %vm167, %v166, 0
    %173 = vmatprep.subr.mxu0 0.0
    %174 = vmatpush1.xpose.msra.mxu0 %v171
    %175 = vmatprep.subr.mxu0 0.0
    %176 = vmatpush1.xpose.msra.mxu0 0.0
    %177 = vmatprep.subr.mxu0 0.0
    %178 = vmatpush1.xpose.msra.mxu0 0.0
    %179 = vmatprep.subr.mxu0 0.0
    %180 = vmatpush1.xpose.msra.mxu0 0.0
    %181 = vmatprep.subr.mxu0 0.0
    %182 = vmatpush1.xpose.msra.mxu0 0.0
    %183 = vmatprep.subr.mxu0 0.0
    %184 = vmatpush1.xpose.msra.mxu0 0.0
    %185 = vmatprep.subr.mxu0 0.0
    %186 = vmatpush1.xpose.msra.mxu0 0.0
    %187 = vmatprep.subr.mxu0 0.0
    %188 = vmatpush1.xpose.msra.mxu0 0.0
    %189 = vmatprep.subr.mxu0 0.0
    %190 = vmatpush1.xpose.msra.mxu0 0.0
    %191 = vmatprep.subr.mxu0 0.0
    %192 = vmatpush1.xpose.msra.mxu0 0.0
    %193 = vmatprep.subr.mxu0 0.0
    %194 = vmatpush1.xpose.msra.mxu0 0.0
    %195 = vmatprep.subr.mxu0 0.0
    %196 = vmatpush1.xpose.msra.mxu0 0.0
    %197 = vmatprep.subr.mxu0 0.0
    %198 = vmatpush1.xpose.msra.mxu0 0.0
    %199 = vmatprep.subr.mxu0 0.0
    %200 = vmatpush1.xpose.msra.mxu0 0.0
    %201 = vmatprep.subr.mxu0 0.0
    %202 = vmatpush1.xpose.msra.mxu0 0.0
    %203 = vmatprep.subr.mxu0 0.0
    %204 = vmatpush1.xpose.msra.mxu0 0.0
    %205 = vmatprep.subr.mxu0 0.0
    %206 = vmatpush1.xpose.msra.mxu0 0.0
    %207 = vmatprep.subr.mxu0 0.0
    %208 = vmatpush1.xpose.msra.mxu0 0.0
    %209 = vmatprep.subr.mxu0 0.0
    %210 = vmatpush1.xpose.msra.mxu0 0.0
    %211 = vmatprep.subr.mxu0 0.0
    %212 = vmatpush1.xpose.msra.mxu0 0.0
    %213 = vmatprep.subr.mxu0 0.0
    %214 = vmatpush1.xpose.msra.mxu0 0.0
    %215 = vmatprep.subr.mxu0 0.0
    %216 = vmatpush1.xpose.msra.mxu0 0.0
    %217 = vmatprep.subr.mxu0 0.0
    %218 = vmatpush1.xpose.msra.mxu0 0.0
    %219 = vmatprep.subr.mxu0 0.0
    %220 = vmatpush1.xpose.msra.mxu0 0.0
    %221 = vmatprep.subr.mxu0 0.0
    %222 = vmatpush1.xpose.msra.mxu0 0.0
    %223 = vmatprep.subr.mxu0 0.0
    %224 = vmatpush1.xpose.msra.mxu0 0.0
    %225 = vmatprep.subr.mxu0 0.0
    %226 = vmatpush1.xpose.msra.mxu0 0.0
    %227 = vmatprep.subr.mxu0 0.0
    %228 = vmatpush1.xpose.msra.mxu0 0.0
    %229 = vmatprep.subr.mxu0 0.0
    %230 = vmatpush1.xpose.msra.mxu0 0.0
    %231 = vmatprep.subr.mxu0 0.0
    %232 = vmatpush1.xpose.msra.mxu0 0.0
    %233 = vmatprep.subr.mxu0 0.0
    %234 = vmatpush1.xpose.msra.mxu0 0.0
    %235 = vmatprep.subr.mxu0 0.0
    %236 = vmatpush1.xpose.msra.mxu0 0.0
    %237 = vmatprep.mubr.f32.mxu0 0.0
    %238 = vmatmul.mubr.f32.gmra.mrb[0].mxu0 %v169
    %v239 = vpop.f32.mrb[0].mxu0
    %v240 = vadd.f32 %v157, %v239
    %v241 = vpop.f32.mrb[0].mxu0
    %242 = vdwg.mxu0
    %244 = vrot.lane.b32.xlu0 %v125, 96
    %v245 = vpop.permute.xlu0 %244
    %v247 = vsel %vm167, %v129, 0
    %v249 = vsel %vm167, %v245, 0
    %251 = vmatprep.subr.mxu0 0.0
    %252 = vmatpush1.xpose.msra.mxu0 %v249
    %253 = vmatprep.subr.mxu0 0.0
    %254 = vmatpush1.xpose.msra.mxu0 0.0
    %255 = vmatprep.subr.mxu0 0.0
    %256 = vmatpush1.xpose.msra.mxu0 0.0
    %257 = vmatprep.subr.mxu0 0.0
    %258 = vmatpush1.xpose.msra.mxu0 0.0
    %259 = vmatprep.subr.mxu0 0.0
    %260 = vmatpush1.xpose.msra.mxu0 0.0
    %261 = vmatprep.subr.mxu0 0.0
    %262 = vmatpush1.xpose.msra.mxu0 0.0
    %263 = vmatprep.subr.mxu0 0.0
    %264 = vmatpush1.xpose.msra.mxu0 0.0
    %265 = vmatprep.subr.mxu0 0.0
    %266 = vmatpush1.xpose.msra.mxu0 0.0
    %267 = vmatprep.subr.mxu0 0.0
    %268 = vmatpush1.xpose.msra.mxu0 0.0
    %269 = vmatprep.subr.mxu0 0.0
    %270 = vmatpush1.xpose.msra.mxu0 0.0
    %271 = vmatprep.subr.mxu0 0.0
    %272 = vmatpush1.xpose.msra.mxu0 0.0
    %273 = vmatprep.subr.mxu0 0.0
    %274 = vmatpush1.xpose.msra.mxu0 0.0
    %275 = vmatprep.subr.mxu0 0.0
    %276 = vmatpush1.xpose.msra.mxu0 0.0
    %277 = vmatprep.subr.mxu0 0.0
    %278 = vmatpush1.xpose.msra.mxu0 0.0
    %279 = vmatprep.subr.mxu0 0.0
    %280 = vmatpush1.xpose.msra.mxu0 0.0
    %281 = vmatprep.subr.mxu0 0.0
    %282 = vmatpush1.xpose.msra.mxu0 0.0
    %283 = vmatprep.subr.mxu0 0.0
    %284 = vmatpush1.xpose.msra.mxu0 0.0
    %285 = vmatprep.subr.mxu0 0.0
    %286 = vmatpush1.xpose.msra.mxu0 0.0
    %287 = vmatprep.subr.mxu0 0.0
    %288 = vmatpush1.xpose.msra.mxu0 0.0
    %289 = vmatprep.subr.mxu0 0.0
    %290 = vmatpush1.xpose.msra.mxu0 0.0
    %291 = vmatprep.subr.mxu0 0.0
    %292 = vmatpush1.xpose.msra.mxu0 0.0
    %293 = vmatprep.subr.mxu0 0.0
    %294 = vmatpush1.xpose.msra.mxu0 0.0
    %295 = vmatprep.subr.mxu0 0.0
    %296 = vmatpush1.xpose.msra.mxu0 0.0
    %297 = vmatprep.subr.mxu0 0.0
    %298 = vmatpush1.xpose.msra.mxu0 0.0
    %299 = vmatprep.subr.mxu0 0.0
    %300 = vmatpush1.xpose.msra.mxu0 0.0
    %301 = vmatprep.subr.mxu0 0.0
    %302 = vmatpush1.xpose.msra.mxu0 0.0
    %303 = vmatprep.subr.mxu0 0.0
    %304 = vmatpush1.xpose.msra.mxu0 0.0
    %305 = vmatprep.subr.mxu0 0.0
    %306 = vmatpush1.xpose.msra.mxu0 0.0
    %307 = vmatprep.subr.mxu0 0.0
    %308 = vmatpush1.xpose.msra.mxu0 0.0
    %309 = vmatprep.subr.mxu0 0.0
    %310 = vmatpush1.xpose.msra.mxu0 0.0
    %311 = vmatprep.subr.mxu0 0.0
    %312 = vmatpush1.xpose.msra.mxu0 0.0
    %313 = vmatprep.subr.mxu0 0.0
    %314 = vmatpush1.xpose.msra.mxu0 0.0
    %315 = vmatprep.mubr.f32.mxu0 0.0
    %316 = vmatmul.mubr.f32.gmra.mrb[0].mxu0 %v247
    %v317 = vpop.f32.mrb[0].mxu0
    %v318 = vadd.f32 %v161, %v317
    %v319 = vpop.f32.mrb[0].mxu0
    %320 = vdwg.mxu0
    %v321 = vsel %vm167, %v240, -inf
    %322 = vmax.xlane.f32.xlu0 %v321
    %v323 = vpop.xlane.xlu0 %322
    %v324 = vsel %vm167, %v318, -inf
    %325 = vmax.xlane.f32.xlu0 %v324
    %v326 = vpop.xlane.xlu0 %325
    %v327 = vsub.f32 %v240, %v323
    %v328 = vsub.f32 %v318, %v326
    %v329 = vmul.f32 %v327, 1.442695
    %v330 = vpow.pop %v329
    %v331 = vmul.f32 %v328, 1.442695
    %v332 = vpow.pop %v331
    %v333 = vsel %vm167, %v330, 0.0
    %334 = vadd.xlane.f32.xlu0 %v333
    %v335 = vpop.xlane.xlu0 %334
    %v336 = vsel %vm167, %v332, 0.0
    %337 = vadd.xlane.f32.xlu0 %v336
    %v338 = vpop.xlane.xlu0 %337
    %v339 = vrcp.pop %v335
    %v340 = vrcp.pop %v338
    %v341 = vmul.f32 %v330, %v339
    %v342 = vmul.f32 %v332, %v340
    %343 = vrot.lane.b32.xlu0 %v120, 64
    %v344 = vpop.permute.xlu0 %343
    %v347 = vsel %vm167, %v341, 0
    %349 = vmatprep.subr.mxu0 0.0
    %350 = vmatpush1.msra.mxu0 %v344
    %351 = vmatprep.subr.mxu0 0.0
    %352 = vmatpush1.msra.mxu0 0.0
    %353 = vmatprep.subr.mxu0 0.0
    %354 = vmatpush1.msra.mxu0 0.0
    %355 = vmatprep.subr.mxu0 0.0
    %356 = vmatpush1.msra.mxu0 0.0
    %357 = vmatprep.subr.mxu0 0.0
    %358 = vmatpush1.msra.mxu0 0.0
    %359 = vmatprep.subr.mxu0 0.0
    %360 = vmatpush1.msra.mxu0 0.0
    %361 = vmatprep.subr.mxu0 0.0
    %362 = vmatpush1.msra.mxu0 0.0
    %363 = vmatprep.subr.mxu0 0.0
    %364 = vmatpush1.msra.mxu0 0.0
    %365 = vmatprep.subr.mxu0 0.0
    %366 = vmatpush1.msra.mxu0 0.0
    %367 = vmatprep.subr.mxu0 0.0
    %368 = vmatpush1.msra.mxu0 0.0
    %369 = vmatprep.subr.mxu0 0.0
    %370 = vmatpush1.msra.mxu0 0.0
    %371 = vmatprep.subr.mxu0 0.0
    %372 = vmatpush1.msra.mxu0 0.0
    %373 = vmatprep.subr.mxu0 0.0
    %374 = vmatpush1.msra.mxu0 0.0
    %375 = vmatprep.subr.mxu0 0.0
    %376 = vmatpush1.msra.mxu0 0.0
    %377 = vmatprep.subr.mxu0 0.0
    %378 = vmatpush1.msra.mxu0 0.0
    %379 = vmatprep.subr.mxu0 0.0
    %380 = vmatpush1.msra.mxu0 0.0
    %381 = vmatprep.subr.mxu0 0.0
    %382 = vmatpush1.msra.mxu0 0.0
    %383 = vmatprep.subr.mxu0 0.0
    %384 = vmatpush1.msra.mxu0 0.0
    %385 = vmatprep.subr.mxu0 0.0
    %386 = vmatpush1.msra.mxu0 0.0
    %387 = vmatprep.subr.mxu0 0.0
    %388 = vmatpush1.msra.mxu0 0.0
    %389 = vmatprep.subr.mxu0 0.0
    %390 = vmatpush1.msra.mxu0 0.0
    %391 = vmatprep.subr.mxu0 0.0
    %392 = vmatpush1.msra.mxu0 0.0
    %393 = vmatprep.subr.mxu0 0.0
    %394 = vmatpush1.msra.mxu0 0.0
    %395 = vmatprep.subr.mxu0 0.0
    %396 = vmatpush1.msra.mxu0 0.0
    %397 = vmatprep.subr.mxu0 0.0
    %398 = vmatpush1.msra.mxu0 0.0
    %399 = vmatprep.subr.mxu0 0.0
    %400 = vmatpush1.msra.mxu0 0.0
    %401 = vmatprep.subr.mxu0 0.0
    %402 = vmatpush1.msra.mxu0 0.0
    %403 = vmatprep.subr.mxu0 0.0
    %404 = vmatpush1.msra.mxu0 0.0
    %405 = vmatprep.subr.mxu0 0.0
    %406 = vmatpush1.msra.mxu0 0.0
    %407 = vmatprep.subr.mxu0 0.0
    %408 = vmatpush1.msra.mxu0 0.0
    %409 = vmatprep.subr.mxu0 0.0
    %410 = vmatpush1.msra.mxu0 0.0
    %411 = vmatprep.subr.mxu0 0.0
    %412 = vmatpush1.msra.mxu0 0.0
    %413 = vmatprep.mubr.f32.mxu0 0.0
    %414 = vmatmul.mubr.f32.gmra.mrb[0].mxu0 %v347
    %v415 = vpop.f32.mrb[0].mxu0
    %v416 = vadd.f32 0.0, %v415
    %v417 = vpop.f32.mrb[0].mxu0
    %418 = vdwg.mxu0
    %419 = vrot.lane.b32.xlu0 %v125, 64
    %v420 = vpop.permute.xlu0 %419
    %v423 = vsel %vm167, %v342, 0
    %425 = vmatprep.subr.mxu0 0.0
    %426 = vmatpush1.msra.mxu0 %v420
    %427 = vmatprep.subr.mxu0 0.0
    %428 = vmatpush1.msra.mxu0 0.0
    %429 = vmatprep.subr.mxu0 0.0
    %430 = vmatpush1.msra.mxu0 0.0
    %431 = vmatprep.subr.mxu0 0.0
    %432 = vmatpush1.msra.mxu0 0.0
    %433 = vmatprep.subr.mxu0 0.0
    %434 = vmatpush1.msra.mxu0 0.0
    %435 = vmatprep.subr.mxu0 0.0
    %436 = vmatpush1.msra.mxu0 0.0
    %437 = vmatprep.subr.mxu0 0.0
    %438 = vmatpush1.msra.mxu0 0.0
    %439 = vmatprep.subr.mxu0 0.0
    %440 = vmatpush1.msra.mxu0 0.0
    %441 = vmatprep.subr.mxu0 0.0
    %442 = vmatpush1.msra.mxu0 0.0
    %443 = vmatprep.subr.mxu0 0.0
    %444 = vmatpush1.msra.mxu0 0.0
    %445 = vmatprep.subr.mxu0 0.0
    %446 = vmatpush1.msra.mxu0 0.0
    %447 = vmatprep.subr.mxu0 0.0
    %448 = vmatpush1.msra.mxu0 0.0
    %449 = vmatprep.subr.mxu0 0.0
    %450 = vmatpush1.msra.mxu0 0.0
    %451 = vmatprep.subr.mxu0 0.0
    %452 = vmatpush1.msra.mxu0 0.0
    %453 = vmatprep.subr.mxu0 0.0
    %454 = vmatpush1.msra.mxu0 0.0
    %455 = vmatprep.subr.mxu0 0.0
    %456 = vmatpush1.msra.mxu0 0.0
    %457 = vmatprep.subr.mxu0 0.0
    %458 = vmatpush1.msra.mxu0 0.0
    %459 = vmatprep.subr.mxu0 0.0
    %460 = vmatpush1.msra.mxu0 0.0
    %461 = vmatprep.subr.mxu0 0.0
    %462 = vmatpush1.msra.mxu0 0.0
    %463 = vmatprep.subr.mxu0 0.0
    %464 = vmatpush1.msra.mxu0 0.0
    %465 = vmatprep.subr.mxu0 0.0
    %466 = vmatpush1.msra.mxu0 0.0
    %467 = vmatprep.subr.mxu0 0.0
    %468 = vmatpush1.msra.mxu0 0.0
    %469 = vmatprep.subr.mxu0 0.0
    %470 = vmatpush1.msra.mxu0 0.0
    %471 = vmatprep.subr.mxu0 0.0
    %472 = vmatpush1.msra.mxu0 0.0
    %473 = vmatprep.subr.mxu0 0.0
    %474 = vmatpush1.msra.mxu0 0.0
    %475 = vmatprep.subr.mxu0 0.0
    %476 = vmatpush1.msra.mxu0 0.0
    %477 = vmatprep.subr.mxu0 0.0
    %478 = vmatpush1.msra.mxu0 0.0
    %479 = vmatprep.subr.mxu0 0.0
    %480 = vmatpush1.msra.mxu0 0.0
    %481 = vmatprep.subr.mxu0 0.0
    %482 = vmatpush1.msra.mxu0 0.0
    %483 = vmatprep.subr.mxu0 0.0
    %484 = vmatpush1.msra.mxu0 0.0
    %485 = vmatprep.subr.mxu0 0.0
    %486 = vmatpush1.msra.mxu0 0.0
    %487 = vmatprep.subr.mxu0 0.0
    %488 = vmatpush1.msra.mxu0 0.0
    %489 = vmatprep.mubr.f32.mxu0 0.0
    %490 = vmatmul.mubr.f32.gmra.mrb[0].mxu0 %v423
    %v491 = vpop.f32.mrb[0].mxu0
    %v492 = vadd.f32 0.0, %v491
    %v493 = vpop.f32.mrb[0].mxu0
    %494 = vdwg.mxu0
    %495 = vrot.lane.b32.xlu0 %v128, 120
    %v496 = vpop.permute.xlu0 %495
    %497 = vrot.lane.b32.xlu0 %v120, 88
    %v498 = vpop.permute.xlu0 %497
    %v499 = vsel %vm167, %v496, 0
    %v501 = vsel %vm167, %v498, 0
    %503 = vmatprep.subr.mxu0 0.0
    %504 = vmatpush1.xpose.msra.mxu0 %v501
    %505 = vmatprep.subr.mxu0 0.0
    %506 = vmatpush1.xpose.msra.mxu0 0.0
    %507 = vmatprep.subr.mxu0 0.0
    %508 = vmatpush1.xpose.msra.mxu0 0.0
    %509 = vmatprep.subr.mxu0 0.0
    %510 = vmatpush1.xpose.msra.mxu0 0.0
    %511 = vmatprep.subr.mxu0 0.0
    %512 = vmatpush1.xpose.msra.mxu0 0.0
    %513 = vmatprep.subr.mxu0 0.0
    %514 = vmatpush1.xpose.msra.mxu0 0.0
    %515 = vmatprep.subr.mxu0 0.0
    %516 = vmatpush1.xpose.msra.mxu0 0.0
    %517 = vmatprep.subr.mxu0 0.0
    %518 = vmatpush1.xpose.msra.mxu0 0.0
    %519 = vmatprep.subr.mxu0 0.0
    %520 = vmatpush1.xpose.msra.mxu0 0.0
    %521 = vmatprep.subr.mxu0 0.0
    %522 = vmatpush1.xpose.msra.mxu0 0.0
    %523 = vmatprep.subr.mxu0 0.0
    %524 = vmatpush1.xpose.msra.mxu0 0.0
    %525 = vmatprep.subr.mxu0 0.0
    %526 = vmatpush1.xpose.msra.mxu0 0.0
    %527 = vmatprep.subr.mxu0 0.0
    %528 = vmatpush1.xpose.msra.mxu0 0.0
    %529 = vmatprep.subr.mxu0 0.0
    %530 = vmatpush1.xpose.msra.mxu0 0.0
    %531 = vmatprep.subr.mxu0 0.0
    %532 = vmatpush1.xpose.msra.mxu0 0.0
    %533 = vmatprep.subr.mxu0 0.0
    %534 = vmatpush1.xpose.msra.mxu0 0.0
    %535 = vmatprep.subr.mxu0 0.0
    %536 = vmatpush1.xpose.msra.mxu0 0.0
    %537 = vmatprep.subr.mxu0 0.0
    %538 = vmatpush1.xpose.msra.mxu0 0.0
    %539 = vmatprep.subr.mxu0 0.0
    %540 = vmatpush1.xpose.msra.mxu0 0.0
    %541 = vmatprep.subr.mxu0 0.0
    %542 = vmatpush1.xpose.msra.mxu0 0.0
    %543 = vmatprep.subr.mxu0 0.0
    %544 = vmatpush1.xpose.msra.mxu0 0.0
    %545 = vmatprep.subr.mxu0 0.0
    %546 = vmatpush1.xpose.msra.mxu0 0.0
    %547 = vmatprep.subr.mxu0 0.0
    %548 = vmatpush1.xpose.msra.mxu0 0.0
    %549 = vmatprep.subr.mxu0 0.0
    %550 = vmatpush1.xpose.msra.mxu0 0.0
    %551 = vmatprep.subr.mxu0 0.0
    %552 = vmatpush1.xpose.msra.mxu0 0.0
    %553 = vmatprep.subr.mxu0 0.0
    %554 = vmatpush1.xpose.msra.mxu0 0.0
    %555 = vmatprep.subr.mxu0 0.0
    %556 = vmatpush1.xpose.msra.mxu0 0.0
    %557 = vmatprep.subr.mxu0 0.0
    %558 = vmatpush1.xpose.msra.mxu0 0.0
    %559 = vmatprep.subr.mxu0 0.0
    %560 = vmatpush1.xpose.msra.mxu0 0.0
    %561 = vmatprep.subr.mxu0 0.0
    %562 = vmatpush1.xpose.msra.mxu0 0.0
    %563 = vmatprep.subr.mxu0 0.0
    %564 = vmatpush1.xpose.msra.mxu0 0.0
    %565 = vmatprep.subr.mxu0 0.0
    %566 = vmatpush1.xpose.msra.mxu0 0.0
    %567 = vmatprep.mubr.f32.mxu0 0.0
    %568 = vmatmul.mubr.f32.gmra.mrb[0].mxu0 %v499
    %v569 = vpop.f32.mrb[0].mxu0
    %v570 = vadd.f32 %v157, %v569
    %v571 = vpop.f32.mrb[0].mxu0
    %572 = vdwg.mxu0
    %573 = vrot.lane.b32.xlu0 %v129, 120
    %v574 = vpop.permute.xlu0 %573
    %575 = vrot.lane.b32.xlu0 %v125, 88
    %v576 = vpop.permute.xlu0 %575
    %v577 = vsel %vm167, %v574, 0
    %v579 = vsel %vm167, %v576, 0
    %581 = vmatprep.subr.mxu0 0.0
    %582 = vmatpush1.xpose.msra.mxu0 %v579
    %583 = vmatprep.subr.mxu0 0.0
    %584 = vmatpush1.xpose.msra.mxu0 0.0
    %585 = vmatprep.subr.mxu0 0.0
    %586 = vmatpush1.xpose.msra.mxu0 0.0
    %587 = vmatprep.subr.mxu0 0.0
    %588 = vmatpush1.xpose.msra.mxu0 0.0
    %589 = vmatprep.subr.mxu0 0.0
    %590 = vmatpush1.xpose.msra.mxu0 0.0
    %591 = vmatprep.subr.mxu0 0.0
    %592 = vmatpush1.xpose.msra.mxu0 0.0
    %593 = vmatprep.subr.mxu0 0.0
    %594 = vmatpush1.xpose.msra.mxu0 0.0
    %595 = vmatprep.subr.mxu0 0.0
    %596 = vmatpush1.xpose.msra.mxu0 0.0
    %597 = vmatprep.subr.mxu0 0.0
    %598 = vmatpush1.xpose.msra.mxu0 0.0
    %599 = vmatprep.subr.mxu0 0.0
    %600 = vmatpush1.xpose.msra.mxu0 0.0
    %601 = vmatprep.subr.mxu0 0.0
    %602 = vmatpush1.xpose.msra.mxu0 0.0
    %603 = vmatprep.subr.mxu0 0.0
    %604 = vmatpush1.xpose.msra.mxu0 0.0
    %605 = vmatprep.subr.mxu0 0.0
    %606 = vmatpush1.xpose.msra.mxu0 0.0
    %607 = vmatprep.subr.mxu0 0.0
    %608 = vmatpush1.xpose.msra.mxu0 0.0
    %609 = vmatprep.subr.mxu0 0.0
    %610 = vmatpush1.xpose.msra.mxu0 0.0
    %611 = vmatprep.subr.mxu0 0.0
    %612 = vmatpush1.xpose.msra.mxu0 0.0
    %613 = vmatprep.subr.mxu0 0.0
    %614 = vmatpush1.xpose.msra.mxu0 0.0
    %615 = vmatprep.subr.mxu0 0.0
    %616 = vmatpush1.xpose.msra.mxu0 0.0
    %617 = vmatprep.subr.mxu0 0.0
    %618 = vmatpush1.xpose.msra.mxu0 0.0
    %619 = vmatprep.subr.mxu0 0.0
    %620 = vmatpush1.xpose.msra.mxu0 0.0
    %621 = vmatprep.subr.mxu0 0.0
    %622 = vmatpush1.xpose.msra.mxu0 0.0
    %623 = vmatprep.subr.mxu0 0.0
    %624 = vmatpush1.xpose.msra.mxu0 0.0
    %625 = vmatprep.subr.mxu0 0.0
    %626 = vmatpush1.xpose.msra.mxu0 0.0
    %627 = vmatprep.subr.mxu0 0.0
    %628 = vmatpush1.xpose.msra.mxu0 0.0
    %629 = vmatprep.subr.mxu0 0.0
    %630 = vmatpush1.xpose.msra.mxu0 0.0
    %631 = vmatprep.subr.mxu0 0.0
    %632 = vmatpush1.xpose.msra.mxu0 0.0
    %633 = vmatprep.subr.mxu0 0.0
    %634 = vmatpush1.xpose.msra.mxu0 0.0
    %635 = vmatprep.subr.mxu0 0.0
    %636 = vmatpush1.xpose.msra.mxu0 0.0
    %637 = vmatprep.subr.mxu0 0.0
    %638 = vmatpush1.xpose.msra.mxu0 0.0
    %639 = vmatprep.subr.mxu0 0.0
    %640 = vmatpush1.xpose.msra.mxu0 0.0
    %641 = vmatprep.subr.mxu0 0.0
    %642 = vmatpush1.xpose.msra.mxu0 0.0
    %643 = vmatprep.subr.mxu0 0.0
    %644 = vmatpush1.xpose.msra.mxu0 0.0
    %645 = vmatprep.mubr.f32.mxu0 0.0
    %646 = vmatmul.mubr.f32.gmra.mrb[0].mxu0 %v577
    %v647 = vpop.f32.mrb[0].mxu0
    %v648 = vadd.f32 %v161, %v647
    %v649 = vpop.f32.mrb[0].mxu0
    %650 = vdwg.mxu0
    %v651 = vsel %vm167, %v570, -inf
    %652 = vmax.xlane.f32.xlu0 %v651
    %v653 = vpop.xlane.xlu0 %652
    %v654 = vsel %vm167, %v648, -inf
    %655 = vmax.xlane.f32.xlu0 %v654
    %v656 = vpop.xlane.xlu0 %655
    %v657 = vsub.f32 %v570, %v653
    %v658 = vsub.f32 %v648, %v656
    %v659 = vmul.f32 %v657, 1.442695
    %v660 = vpow.pop %v659
    %v661 = vmul.f32 %v658, 1.442695
    %v662 = vpow.pop %v661
    %v663 = vsel %vm167, %v660, 0.0
    %664 = vadd.xlane.f32.xlu0 %v663
    %v665 = vpop.xlane.xlu0 %664
    %v666 = vsel %vm167, %v662, 0.0
    %667 = vadd.xlane.f32.xlu0 %v666
    %v668 = vpop.xlane.xlu0 %667
    %v669 = vrcp.pop %v665
    %v670 = vrcp.pop %v668
    %v671 = vmul.f32 %v660, %v669
    %v672 = vmul.f32 %v662, %v670
    %673 = vrot.lane.b32.xlu0 %v120, 56
    %v674 = vpop.permute.xlu0 %673
    %v677 = vsel %vm167, %v671, 0
    %679 = vmatprep.subr.mxu0 0.0
    %680 = vmatpush1.msra.mxu0 %v674
    %681 = vmatprep.subr.mxu0 0.0
    %682 = vmatpush1.msra.mxu0 0.0
    %683 = vmatprep.subr.mxu0 0.0
    %684 = vmatpush1.msra.mxu0 0.0
    %685 = vmatprep.subr.mxu0 0.0
    %686 = vmatpush1.msra.mxu0 0.0
    %687 = vmatprep.subr.mxu0 0.0
    %688 = vmatpush1.msra.mxu0 0.0
    %689 = vmatprep.subr.mxu0 0.0
    %690 = vmatpush1.msra.mxu0 0.0
    %691 = vmatprep.subr.mxu0 0.0
    %692 = vmatpush1.msra.mxu0 0.0
    %693 = vmatprep.subr.mxu0 0.0
    %694 = vmatpush1.msra.mxu0 0.0
    %695 = vmatprep.subr.mxu0 0.0
    %696 = vmatpush1.msra.mxu0 0.0
    %697 = vmatprep.subr.mxu0 0.0
    %698 = vmatpush1.msra.mxu0 0.0
    %699 = vmatprep.subr.mxu0 0.0
    %700 = vmatpush1.msra.mxu0 0.0
    %701 = vmatprep.subr.mxu0 0.0
    %702 = vmatpush1.msra.mxu0 0.0
    %703 = vmatprep.subr.mxu0 0.0
    %704 = vmatpush1.msra.mxu0 0.0
    %705 = vmatprep.subr.mxu0 0.0
    %706 = vmatpush1.msra.mxu0 0.0
    %707 = vmatprep.subr.mxu0 0.0
    %708 = vmatpush1.msra.mxu0 0.0
    %709 = vmatprep.subr.mxu0 0.0
    %710 = vmatpush1.msra.mxu0 0.0
    %711 = vmatprep.subr.mxu0 0.0
    %712 = vmatpush1.msra.mxu0 0.0
    %713 = vmatprep.subr.mxu0 0.0
    %714 = vmatpush1.msra.mxu0 0.0
    %715 = vmatprep.subr.mxu0 0.0
    %716 = vmatpush1.msra.mxu0 0.0
    %717 = vmatprep.subr.mxu0 0.0
    %718 = vmatpush1.msra.mxu0 0.0
    %719 = vmatprep.subr.mxu0 0.0
    %720 = vmatpush1.msra.mxu0 0.0
    %721 = vmatprep.subr.mxu0 0.0
    %722 = vmatpush1.msra.mxu0 0.0
    %723 = vmatprep.subr.mxu0 0.0
    %724 = vmatpush1.msra.mxu0 0.0
    %725 = vmatprep.subr.mxu0 0.0
    %726 = vmatpush1.msra.mxu0 0.0
    %727 = vmatprep.subr.mxu0 0.0
    %728 = vmatpush1.msra.mxu0 0.0
    %729 = vmatprep.subr.mxu0 0.0
    %730 = vmatpush1.msra.mxu0 0.0
    %731 = vmatprep.subr.mxu0 0.0
    %732 = vmatpush1.msra.mxu0 0.0
    %733 = vmatprep.subr.mxu0 0.0
    %734 = vmatpush1.msra.mxu0 0.0
    %735 = vmatprep.subr.mxu0 0.0
    %736 = vmatpush1.msra.mxu0 0.0
    %737 = vmatprep.subr.mxu0 0.0
    %738 = vmatpush1.msra.mxu0 0.0
    %739 = vmatprep.subr.mxu0 0.0
    %740 = vmatpush1.msra.mxu0 0.0
    %741 = vmatprep.subr.mxu0 0.0
    %742 = vmatpush1.msra.mxu0 0.0
    %743 = vmatprep.mubr.f32.mxu0 0.0
    %744 = vmatmul.mubr.f32.gmra.mrb[0].mxu0 %v677
    %v745 = vpop.f32.mrb[0].mxu0
    %v746 = vadd.f32 0.0, %v745
    %v747 = vpop.f32.mrb[0].mxu0
    %748 = vdwg.mxu0
    %749 = vrot.lane.b32.xlu0 %v125, 56
    %v750 = vpop.permute.xlu0 %749
    %v753 = vsel %vm167, %v672, 0
    %755 = vmatprep.subr.mxu0 0.0
    %756 = vmatpush1.msra.mxu0 %v750
    %757 = vmatprep.subr.mxu0 0.0
    %758 = vmatpush1.msra.mxu0 0.0
    %759 = vmatprep.subr.mxu0 0.0
    %760 = vmatpush1.msra.mxu0 0.0
    %761 = vmatprep.subr.mxu0 0.0
    %762 = vmatpush1.msra.mxu0 0.0
    %763 = vmatprep.subr.mxu0 0.0
    %764 = vmatpush1.msra.mxu0 0.0
    %765 = vmatprep.subr.mxu0 0.0
    %766 = vmatpush1.msra.mxu0 0.0
    %767 = vmatprep.subr.mxu0 0.0
    %768 = vmatpush1.msra.mxu0 0.0
    %769 = vmatprep.subr.mxu0 0.0
    %770 = vmatpush1.msra.mxu0 0.0
    %771 = vmatprep.subr.mxu0 0.0
    %772 = vmatpush1.msra.mxu0 0.0
    %773 = vmatprep.subr.mxu0 0.0
    %774 = vmatpush1.msra.mxu0 0.0
    %775 = vmatprep.subr.mxu0 0.0
    %776 = vmatpush1.msra.mxu0 0.0
    %777 = vmatprep.subr.mxu0 0.0
    %778 = vmatpush1.msra.mxu0 0.0
    %779 = vmatprep.subr.mxu0 0.0
    %780 = vmatpush1.msra.mxu0 0.0
    %781 = vmatprep.subr.mxu0 0.0
    %782 = vmatpush1.msra.mxu0 0.0
    %783 = vmatprep.subr.mxu0 0.0
    %784 = vmatpush1.msra.mxu0 0.0
    %785 = vmatprep.subr.mxu0 0.0
    %786 = vmatpush1.msra.mxu0 0.0
    %787 = vmatprep.subr.mxu0 0.0
    %788 = vmatpush1.msra.mxu0 0.0
    %789 = vmatprep.subr.mxu0 0.0
    %790 = vmatpush1.msra.mxu0 0.0
    %791 = vmatprep.subr.mxu0 0.0
    %792 = vmatpush1.msra.mxu0 0.0
    %793 = vmatprep.subr.mxu0 0.0
    %794 = vmatpush1.msra.mxu0 0.0
    %795 = vmatprep.subr.mxu0 0.0
    %796 = vmatpush1.msra.mxu0 0.0
    %797 = vmatprep.subr.mxu0 0.0
    %798 = vmatpush1.msra.mxu0 0.0
    %799 = vmatprep.subr.mxu0 0.0
    %800 = vmatpush1.msra.mxu0 0.0
    %801 = vmatprep.subr.mxu0 0.0
    %802 = vmatpush1.msra.mxu0 0.0
    %803 = vmatprep.subr.mxu0 0.0
    %804 = vmatpush1.msra.mxu0 0.0
    %805 = vmatprep.subr.mxu0 0.0
    %806 = vmatpush1.msra.mxu0 0.0
    %807 = vmatprep.subr.mxu0 0.0
    %808 = vmatpush1.msra.mxu0 0.0
    %809 = vmatprep.subr.mxu0 0.0
    %810 = vmatpush1.msra.mxu0 0.0
    %811 = vmatprep.subr.mxu0 0.0
    %812 = vmatpush1.msra.mxu0 0.0
    %813 = vmatprep.subr.mxu0 0.0
    %814 = vmatpush1.msra.mxu0 0.0
    %815 = vmatprep.subr.mxu0 0.0
    %816 = vmatpush1.msra.mxu0 0.0
    %817 = vmatprep.subr.mxu0 0.0
    %818 = vmatpush1.msra.mxu0 0.0
    %819 = vmatprep.mubr.f32.mxu0 0.0
    %820 = vmatmul.mubr.f32.gmra.mrb[0].mxu0 %v753
    %v821 = vpop.f32.mrb[0].mxu0
    %v822 = vadd.f32 0.0, %v821
    %v823 = vpop.f32.mrb[0].mxu0
    %824 = vdwg.mxu0
    %825 = vrot.lane.b32.xlu0 %v128, 112
    %v826 = vpop.permute.xlu0 %825
    %827 = vrot.lane.b32.xlu0 %v120, 80
    %v828 = vpop.permute.xlu0 %827
    %v829 = vsel %vm167, %v826, 0
    %v831 = vsel %vm167, %v828, 0
    %833 = vmatprep.subr.mxu0 0.0
    %834 = vmatpush1.xpose.msra.mxu0 %v831
    %835 = vmatprep.subr.mxu0 0.0
    %836 = vmatpush1.xpose.msra.mxu0 0.0
    %837 = vmatprep.subr.mxu0 0.0
    %838 = vmatpush1.xpose.msra.mxu0 0.0
    %839 = vmatprep.subr.mxu0 0.0
    %840 = vmatpush1.xpose.msra.mxu0 0.0
    %841 = vmatprep.subr.mxu0 0.0
    %842 = vmatpush1.xpose.msra.mxu0 0.0
    %843 = vmatprep.subr.mxu0 0.0
    %844 = vmatpush1.xpose.msra.mxu0 0.0
    %845 = vmatprep.subr.mxu0 0.0
    %846 = vmatpush1.xpose.msra.mxu0 0.0
    %847 = vmatprep.subr.mxu0 0.0
    %848 = vmatpush1.xpose.msra.mxu0 0.0
    %849 = vmatprep.subr.mxu0 0.0
    %850 = vmatpush1.xpose.msra.mxu0 0.0
    %851 = vmatprep.subr.mxu0 0.0
    %852 = vmatpush1.xpose.msra.mxu0 0.0
    %853 = vmatprep.subr.mxu0 0.0
    %854 = vmatpush1.xpose.msra.mxu0 0.0
    %855 = vmatprep.subr.mxu0 0.0
    %856 = vmatpush1.xpose.msra.mxu0 0.0
    %857 = vmatprep.subr.mxu0 0.0
    %858 = vmatpush1.xpose.msra.mxu0 0.0
    %859 = vmatprep.subr.mxu0 0.0
    %860 = vmatpush1.xpose.msra.mxu0 0.0
    %861 = vmatprep.subr.mxu0 0.0
    %862 = vmatpush1.xpose.msra.mxu0 0.0
    %863 = vmatprep.subr.mxu0 0.0
    %864 = vmatpush1.xpose.msra.mxu0 0.0
    %865 = vmatprep.subr.mxu0 0.0
    %866 = vmatpush1.xpose.msra.mxu0 0.0
    %867 = vmatprep.subr.mxu0 0.0
    %868 = vmatpush1.xpose.msra.mxu0 0.0
    %869 = vmatprep.subr.mxu0 0.0
    %870 = vmatpush1.xpose.msra.mxu0 0.0
    %871 = vmatprep.subr.mxu0 0.0
    %872 = vmatpush1.xpose.msra.mxu0 0.0
    %873 = vmatprep.subr.mxu0 0.0
    %874 = vmatpush1.xpose.msra.mxu0 0.0
    %875 = vmatprep.subr.mxu0 0.0
    %876 = vmatpush1.xpose.msra.mxu0 0.0
    %877 = vmatprep.subr.mxu0 0.0
    %878 = vmatpush1.xpose.msra.mxu0 0.0
    %879 = vmatprep.subr.mxu0 0.0
    %880 = vmatpush1.xpose.msra.mxu0 0.0
    %881 = vmatprep.subr.mxu0 0.0
    %882 = vmatpush1.xpose.msra.mxu0 0.0
    %883 = vmatprep.subr.mxu0 0.0
    %884 = vmatpush1.xpose.msra.mxu0 0.0
    %885 = vmatprep.subr.mxu0 0.0
    %886 = vmatpush1.xpose.msra.mxu0 0.0
    %887 = vmatprep.subr.mxu0 0.0
    %888 = vmatpush1.xpose.msra.mxu0 0.0
    %889 = vmatprep.subr.mxu0 0.0
    %890 = vmatpush1.xpose.msra.mxu0 0.0
    %891 = vmatprep.subr.mxu0 0.0
    %892 = vmatpush1.xpose.msra.mxu0 0.0
    %893 = vmatprep.subr.mxu0 0.0
    %894 = vmatpush1.xpose.msra.mxu0 0.0
    %895 = vmatprep.subr.mxu0 0.0
    %896 = vmatpush1.xpose.msra.mxu0 0.0
    %897 = vmatprep.mubr.f32.mxu0 0.0
    %898 = vmatmul.mubr.f32.gmra.mrb[0].mxu0 %v829
    %v899 = vpop.f32.mrb[0].mxu0
    %v900 = vadd.f32 %v157, %v899
    %v901 = vpop.f32.mrb[0].mxu0
    %902 = vdwg.mxu0
    %903 = vrot.lane.b32.xlu0 %v129, 112
    %v904 = vpop.permute.xlu0 %903
    %905 = vrot.lane.b32.xlu0 %v125, 80
    %v906 = vpop.permute.xlu0 %905
    %v907 = vsel %vm167, %v904, 0
    %v909 = vsel %vm167, %v906, 0
    %911 = vmatprep.subr.mxu0 0.0
    %912 = vmatpush1.xpose.msra.mxu0 %v909
    %913 = vmatprep.subr.mxu0 0.0
    %914 = vmatpush1.xpose.msra.mxu0 0.0
    %915 = vmatprep.subr.mxu0 0.0
    %916 = vmatpush1.xpose.msra.mxu0 0.0
    %917 = vmatprep.subr.mxu0 0.0
    %918 = vmatpush1.xpose.msra.mxu0 0.0
    %919 = vmatprep.subr.mxu0 0.0
    %920 = vmatpush1.xpose.msra.mxu0 0.0
    %921 = vmatprep.subr.mxu0 0.0
    %922 = vmatpush1.xpose.msra.mxu0 0.0
    %923 = vmatprep.subr.mxu0 0.0
    %924 = vmatpush1.xpose.msra.mxu0 0.0
    %925 = vmatprep.subr.mxu0 0.0
    %926 = vmatpush1.xpose.msra.mxu0 0.0
    %927 = vmatprep.subr.mxu0 0.0
    %928 = vmatpush1.xpose.msra.mxu0 0.0
    %929 = vmatprep.subr.mxu0 0.0
    %930 = vmatpush1.xpose.msra.mxu0 0.0
    %931 = vmatprep.subr.mxu0 0.0
    %932 = vmatpush1.xpose.msra.mxu0 0.0
    %933 = vmatprep.subr.mxu0 0.0
    %934 = vmatpush1.xpose.msra.mxu0 0.0
    %935 = vmatprep.subr.mxu0 0.0
    %936 = vmatpush1.xpose.msra.mxu0 0.0
    %937 = vmatprep.subr.mxu0 0.0
    %938 = vmatpush1.xpose.msra.mxu0 0.0
    %939 = vmatprep.subr.mxu0 0.0
    %940 = vmatpush1.xpose.msra.mxu0 0.0
    %941 = vmatprep.subr.mxu0 0.0
    %942 = vmatpush1.xpose.msra.mxu0 0.0
    %943 = vmatprep.subr.mxu0 0.0
    %944 = vmatpush1.xpose.msra.mxu0 0.0
    %945 = vmatprep.subr.mxu0 0.0
    %946 = vmatpush1.xpose.msra.mxu0 0.0
    %947 = vmatprep.subr.mxu0 0.0
    %948 = vmatpush1.xpose.msra.mxu0 0.0
    %949 = vmatprep.subr.mxu0 0.0
    %950 = vmatpush1.xpose.msra.mxu0 0.0
    %951 = vmatprep.subr.mxu0 0.0
    %952 = vmatpush1.xpose.msra.mxu0 0.0
    %953 = vmatprep.subr.mxu0 0.0
    %954 = vmatpush1.xpose.msra.mxu0 0.0
    %955 = vmatprep.subr.mxu0 0.0
    %956 = vmatpush1.xpose.msra.mxu0 0.0
    %957 = vmatprep.subr.mxu0 0.0
    %958 = vmatpush1.xpose.msra.mxu0 0.0
    %959 = vmatprep.subr.mxu0 0.0
    %960 = vmatpush1.xpose.msra.mxu0 0.0
    %961 = vmatprep.subr.mxu0 0.0
    %962 = vmatpush1.xpose.msra.mxu0 0.0
    %963 = vmatprep.subr.mxu0 0.0
    %964 = vmatpush1.xpose.msra.mxu0 0.0
    %965 = vmatprep.subr.mxu0 0.0
    %966 = vmatpush1.xpose.msra.mxu0 0.0
    %967 = vmatprep.subr.mxu0 0.0
    %968 = vmatpush1.xpose.msra.mxu0 0.0
    %969 = vmatprep.subr.mxu0 0.0
    %970 = vmatpush1.xpose.msra.mxu0 0.0
    %971 = vmatprep.subr.mxu0 0.0
    %972 = vmatpush1.xpose.msra.mxu0 0.0
    %973 = vmatprep.subr.mxu0 0.0
    %974 = vmatpush1.xpose.msra.mxu0 0.0
    %975 = vmatprep.mubr.f32.mxu0 0.0
    %976 = vmatmul.mubr.f32.gmra.mrb[0].mxu0 %v907
    %v977 = vpop.f32.mrb[0].mxu0
    %v978 = vadd.f32 %v161, %v977
    %v979 = vpop.f32.mrb[0].mxu0
    %980 = vdwg.mxu0
    %v981 = vsel %vm167, %v900, -inf
    %982 = vmax.xlane.f32.xlu0 %v981
    %v983 = vpop.xlane.xlu0 %982
    %v984 = vsel %vm167, %v978, -inf
    %985 = vmax.xlane.f32.xlu0 %v984
    %v986 = vpop.xlane.xlu0 %985
    %v987 = vsub.f32 %v900, %v983
    %v988 = vsub.f32 %v978, %v986
    %v989 = vmul.f32 %v987, 1.442695
    %v990 = vpow.pop %v989
    %v991 = vmul.f32 %v988, 1.442695
    %v992 = vpow.pop %v991
    %v993 = vsel %vm167, %v990, 0.0
    %994 = vadd.xlane.f32.xlu0 %v993
    %v995 = vpop.xlane.xlu0 %994
    %v996 = vsel %vm167, %v992, 0.0
    %997 = vadd.xlane.f32.xlu0 %v996
    %v998 = vpop.xlane.xlu0 %997
    %v999 = vrcp.pop %v995
    %v1000 = vrcp.pop %v998
    %v1001 = vmul.f32 %v990, %v999
    %v1002 = vmul.f32 %v992, %v1000
    %1003 = vrot.lane.b32.xlu0 %v120, 48
    %v1004 = vpop.permute.xlu0 %1003
    %v1007 = vsel %vm167, %v1001, 0
    %1009 = vmatprep.subr.mxu0 0.0
    %1010 = vmatpush1.msra.mxu0 %v1004
    %1011 = vmatprep.subr.mxu0 0.0
    %1012 = vmatpush1.msra.mxu0 0.0
    %1013 = vmatprep.subr.mxu0 0.0
    %1014 = vmatpush1.msra.mxu0 0.0
    %1015 = vmatprep.subr.mxu0 0.0
    %1016 = vmatpush1.msra.mxu0 0.0
    %1017 = vmatprep.subr.mxu0 0.0
    %1018 = vmatpush1.msra.mxu0 0.0
    %1019 = vmatprep.subr.mxu0 0.0
    %1020 = vmatpush1.msra.mxu0 0.0
    %1021 = vmatprep.subr.mxu0 0.0
    %1022 = vmatpush1.msra.mxu0 0.0
    %1023 = vmatprep.subr.mxu0 0.0
    %1024 = vmatpush1.msra.mxu0 0.0
    %1025 = vmatprep.subr.mxu0 0.0
    %1026 = vmatpush1.msra.mxu0 0.0
    %1027 = vmatprep.subr.mxu0 0.0
    %1028 = vmatpush1.msra.mxu0 0.0
    %1029 = vmatprep.subr.mxu0 0.0
    %1030 = vmatpush1.msra.mxu0 0.0
    %1031 = vmatprep.subr.mxu0 0.0
    %1032 = vmatpush1.msra.mxu0 0.0
    %1033 = vmatprep.subr.mxu0 0.0
    %1034 = vmatpush1.msra.mxu0 0.0
    %1035 = vmatprep.subr.mxu0 0.0
    %1036 = vmatpush1.msra.mxu0 0.0
    %1037 = vmatprep.subr.mxu0 0.0
    %1038 = vmatpush1.msra.mxu0 0.0
    %1039 = vmatprep.subr.mxu0 0.0
    %1040 = vmatpush1.msra.mxu0 0.0
    %1041 = vmatprep.subr.mxu0 0.0
    %1042 = vmatpush1.msra.mxu0 0.0
    %1043 = vmatprep.subr.mxu0 0.0
    %1044 = vmatpush1.msra.mxu0 0.0
    %1045 = vmatprep.subr.mxu0 0.0
    %1046 = vmatpush1.msra.mxu0 0.0
    %1047 = vmatprep.subr.mxu0 0.0
    %1048 = vmatpush1.msra.mxu0 0.0
    %1049 = vmatprep.subr.mxu0 0.0
    %1050 = vmatpush1.msra.mxu0 0.0
    %1051 = vmatprep.subr.mxu0 0.0
    %1052 = vmatpush1.msra.mxu0 0.0
    %1053 = vmatprep.subr.mxu0 0.0
    %1054 = vmatpush1.msra.mxu0 0.0
    %1055 = vmatprep.subr.mxu0 0.0
    %1056 = vmatpush1.msra.mxu0 0.0
    %1057 = vmatprep.subr.mxu0 0.0
    %1058 = vmatpush1.msra.mxu0 0.0
    %1059 = vmatprep.subr.mxu0 0.0
    %1060 = vmatpush1.msra.mxu0 0.0
    %1061 = vmatprep.subr.mxu0 0.0
    %1062 = vmatpush1.msra.mxu0 0.0
    %1063 = vmatprep.subr.mxu0 0.0
    %1064 = vmatpush1.msra.mxu0 0.0
    %1065 = vmatprep.subr.mxu0 0.0
    %1066 = vmatpush1.msra.mxu0 0.0
    %1067 = vmatprep.subr.mxu0 0.0
    %1068 = vmatpush1.msra.mxu0 0.0
    %1069 = vmatprep.subr.mxu0 0.0
    %1070 = vmatpush1.msra.mxu0 0.0
    %1071 = vmatprep.subr.mxu0 0.0
    %1072 = vmatpush1.msra.mxu0 0.0
    %1073 = vmatprep.mubr.f32.mxu0 0.0
    %1074 = vmatmul.mubr.f32.gmra.mrb[0].mxu0 %v1007
    %v1075 = vpop.f32.mrb[0].mxu0
    %v1076 = vadd.f32 0.0, %v1075
    %v1077 = vpop.f32.mrb[0].mxu0
    %1078 = vdwg.mxu0
    %1079 = vrot.lane.b32.xlu0 %v125, 48
    %v1080 = vpop.permute.xlu0 %1079
    %v1083 = vsel %vm167, %v1002, 0
    %1085 = vmatprep.subr.mxu0 0.0
    %1086 = vmatpush1.msra.mxu0 %v1080
    %1087 = vmatprep.subr.mxu0 0.0
    %1088 = vmatpush1.msra.mxu0 0.0
    %1089 = vmatprep.subr.mxu0 0.0
    %1090 = vmatpush1.msra.mxu0 0.0
    %1091 = vmatprep.subr.mxu0 0.0
    %1092 = vmatpush1.msra.mxu0 0.0
    %1093 = vmatprep.subr.mxu0 0.0
    %1094 = vmatpush1.msra.mxu0 0.0
    %1095 = vmatprep.subr.mxu0 0.0
    %1096 = vmatpush1.msra.mxu0 0.0
    %1097 = vmatprep.subr.mxu0 0.0
    %1098 = vmatpush1.msra.mxu0 0.0
    %1099 = vmatprep.subr.mxu0 0.0
    %1100 = vmatpush1.msra.mxu0 0.0
    %1101 = vmatprep.subr.mxu0 0.0
    %1102 = vmatpush1.msra.mxu0 0.0
    %1103 = vmatprep.subr.mxu0 0.0
    %1104 = vmatpush1.msra.mxu0 0.0
    %1105 = vmatprep.subr.mxu0 0.0
    %1106 = vmatpush1.msra.mxu0 0.0
    %1107 = vmatprep.subr.mxu0 0.0
    %1108 = vmatpush1.msra.mxu0 0.0
    %1109 = vmatprep.subr.mxu0 0.0
    %1110 = vmatpush1.msra.mxu0 0.0
    %1111 = vmatprep.subr.mxu0 0.0
    %1112 = vmatpush1.msra.mxu0 0.0
    %1113 = vmatprep.subr.mxu0 0.0
    %1114 = vmatpush1.msra.mxu0 0.0
    %1115 = vmatprep.subr.mxu0 0.0
    %1116 = vmatpush1.msra.mxu0 0.0
    %1117 = vmatprep.subr.mxu0 0.0
    %1118 = vmatpush1.msra.mxu0 0.0
    %1119 = vmatprep.subr.mxu0 0.0
    %1120 = vmatpush1.msra.mxu0 0.0
    %1121 = vmatprep.subr.mxu0 0.0
    %1122 = vmatpush1.msra.mxu0 0.0
    %1123 = vmatprep.subr.mxu0 0.0
    %1124 = vmatpush1.msra.mxu0 0.0
    %1125 = vmatprep.subr.mxu0 0.0
    %1126 = vmatpush1.msra.mxu0 0.0
    %1127 = vmatprep.subr.mxu0 0.0
    %1128 = vmatpush1.msra.mxu0 0.0
    %1129 = vmatprep.subr.mxu0 0.0
    %1130 = vmatpush1.msra.mxu0 0.0
    %1131 = vmatprep.subr.mxu0 0.0
    %1132 = vmatpush1.msra.mxu0 0.0
    %1133 = vmatprep.subr.mxu0 0.0
    %1134 = vmatpush1.msra.mxu0 0.0
    %1135 = vmatprep.subr.mxu0 0.0
    %1136 = vmatpush1.msra.mxu0 0.0
    %1137 = vmatprep.subr.mxu0 0.0
    %1138 = vmatpush1.msra.mxu0 0.0
    %1139 = vmatprep.subr.mxu0 0.0
    %1140 = vmatpush1.msra.mxu0 0.0
    %1141 = vmatprep.subr.mxu0 0.0
    %1142 = vmatpush1.msra.mxu0 0.0
    %1143 = vmatprep.subr.mxu0 0.0
    %1144 = vmatpush1.msra.mxu0 0.0
    %1145 = vmatprep.subr.mxu0 0.0
    %1146 = vmatpush1.msra.mxu0 0.0
    %1147 = vmatprep.subr.mxu0 0.0
    %1148 = vmatpush1.msra.mxu0 0.0
    %1149 = vmatprep.mubr.f32.mxu0 0.0
    %1150 = vmatmul.mubr.f32.gmra.mrb[0].mxu0 %v1083
    %v1151 = vpop.f32.mrb[0].mxu0
    %v1152 = vadd.f32 0.0, %v1151
    %v1153 = vpop.f32.mrb[0].mxu0
    %1154 = vdwg.mxu0
    %1155 = vrot.lane.b32.xlu0 %v128, 104
    %v1156 = vpop.permute.xlu0 %1155
    %1157 = vrot.lane.b32.xlu0 %v120, 72
    %v1158 = vpop.permute.xlu0 %1157
    %v1159 = vsel %vm167, %v1156, 0
    %v1161 = vsel %vm167, %v1158, 0
    %1163 = vmatprep.subr.mxu0 0.0
    %1164 = vmatpush1.xpose.msra.mxu0 %v1161
    %1165 = vmatprep.subr.mxu0 0.0
    %1166 = vmatpush1.xpose.msra.mxu0 0.0
    %1167 = vmatprep.subr.mxu0 0.0
    %1168 = vmatpush1.xpose.msra.mxu0 0.0
    %1169 = vmatprep.subr.mxu0 0.0
    %1170 = vmatpush1.xpose.msra.mxu0 0.0
    %1171 = vmatprep.subr.mxu0 0.0
    %1172 = vmatpush1.xpose.msra.mxu0 0.0
    %1173 = vmatprep.subr.mxu0 0.0
    %1174 = vmatpush1.xpose.msra.mxu0 0.0
    %1175 = vmatprep.subr.mxu0 0.0
    %1176 = vmatpush1.xpose.msra.mxu0 0.0
    %1177 = vmatprep.subr.mxu0 0.0
    %1178 = vmatpush1.xpose.msra.mxu0 0.0
    %1179 = vmatprep.subr.mxu0 0.0
    %1180 = vmatpush1.xpose.msra.mxu0 0.0
    %1181 = vmatprep.subr.mxu0 0.0
    %1182 = vmatpush1.xpose.msra.mxu0 0.0
    %1183 = vmatprep.subr.mxu0 0.0
    %1184 = vmatpush1.xpose.msra.mxu0 0.0
    %1185 = vmatprep.subr.mxu0 0.0
    %1186 = vmatpush1.xpose.msra.mxu0 0.0
    %1187 = vmatprep.subr.mxu0 0.0
    %1188 = vmatpush1.xpose.msra.mxu0 0.0
    %1189 = vmatprep.subr.mxu0 0.0
    %1190 = vmatpush1.xpose.msra.mxu0 0.0
    %1191 = vmatprep.subr.mxu0 0.0
    %1192 = vmatpush1.xpose.msra.mxu0 0.0
    %1193 = vmatprep.subr.mxu0 0.0
    %1194 = vmatpush1.xpose.msra.mxu0 0.0
    %1195 = vmatprep.subr.mxu0 0.0
    %1196 = vmatpush1.xpose.msra.mxu0 0.0
    %1197 = vmatprep.subr.mxu0 0.0
    %1198 = vmatpush1.xpose.msra.mxu0 0.0
    %1199 = vmatprep.subr.mxu0 0.0
    %1200 = vmatpush1.xpose.msra.mxu0 0.0
    %1201 = vmatprep.subr.mxu0 0.0
    %1202 = vmatpush1.xpose.msra.mxu0 0.0
    %1203 = vmatprep.subr.mxu0 0.0
    %1204 = vmatpush1.xpose.msra.mxu0 0.0
    %1205 = vmatprep.subr.mxu0 0.0
    %1206 = vmatpush1.xpose.msra.mxu0 0.0
    %1207 = vmatprep.subr.mxu0 0.0
    %1208 = vmatpush1.xpose.msra.mxu0 0.0
    %1209 = vmatprep.subr.mxu0 0.0
    %1210 = vmatpush1.xpose.msra.mxu0 0.0
    %1211 = vmatprep.subr.mxu0 0.0
    %1212 = vmatpush1.xpose.msra.mxu0 0.0
    %1213 = vmatprep.subr.mxu0 0.0
    %1214 = vmatpush1.xpose.msra.mxu0 0.0
    %1215 = vmatprep.subr.mxu0 0.0
    %1216 = vmatpush1.xpose.msra.mxu0 0.0
    %1217 = vmatprep.subr.mxu0 0.0
    %1218 = vmatpush1.xpose.msra.mxu0 0.0
    %1219 = vmatprep.subr.mxu0 0.0
    %1220 = vmatpush1.xpose.msra.mxu0 0.0
    %1221 = vmatprep.subr.mxu0 0.0
    %1222 = vmatpush1.xpose.msra.mxu0 0.0
    %1223 = vmatprep.subr.mxu0 0.0
    %1224 = vmatpush1.xpose.msra.mxu0 0.0
    %1225 = vmatprep.subr.mxu0 0.0
    %1226 = vmatpush1.xpose.msra.mxu0 0.0
    %1227 = vmatprep.mubr.f32.mxu0 0.0
    %1228 = vmatmul.mubr.f32.gmra.mrb[0].mxu0 %v1159
    %v1229 = vpop.f32.mrb[0].mxu0
    %v1230 = vadd.f32 %v157, %v1229
    %v1231 = vpop.f32.mrb[0].mxu0
    %1232 = vdwg.mxu0
    %1233 = vrot.lane.b32.xlu0 %v129, 104
    %v1234 = vpop.permute.xlu0 %1233
    %1235 = vrot.lane.b32.xlu0 %v125, 72
    %v1236 = vpop.permute.xlu0 %1235
    %v1237 = vsel %vm167, %v1234, 0
    %v1239 = vsel %vm167, %v1236, 0
    %1241 = vmatprep.subr.mxu0 0.0
    %1242 = vmatpush1.xpose.msra.mxu0 %v1239
    %1243 = vmatprep.subr.mxu0 0.0
    %1244 = vmatpush1.xpose.msra.mxu0 0.0
    %1245 = vmatprep.subr.mxu0 0.0
    %1246 = vmatpush1.xpose.msra.mxu0 0.0
    %1247 = vmatprep.subr.mxu0 0.0
    %1248 = vmatpush1.xpose.msra.mxu0 0.0
    %1249 = vmatprep.subr.mxu0 0.0
    %1250 = vmatpush1.xpose.msra.mxu0 0.0
    %1251 = vmatprep.subr.mxu0 0.0
    %1252 = vmatpush1.xpose.msra.mxu0 0.0
    %1253 = vmatprep.subr.mxu0 0.0
    %1254 = vmatpush1.xpose.msra.mxu0 0.0
    %1255 = vmatprep.subr.mxu0 0.0
    %1256 = vmatpush1.xpose.msra.mxu0 0.0
    %1257 = vmatprep.subr.mxu0 0.0
    %1258 = vmatpush1.xpose.msra.mxu0 0.0
    %1259 = vmatprep.subr.mxu0 0.0
    %1260 = vmatpush1.xpose.msra.mxu0 0.0
    %1261 = vmatprep.subr.mxu0 0.0
    %1262 = vmatpush1.xpose.msra.mxu0 0.0
    %1263 = vmatprep.subr.mxu0 0.0
    %1264 = vmatpush1.xpose.msra.mxu0 0.0
    %1265 = vmatprep.subr.mxu0 0.0
    %1266 = vmatpush1.xpose.msra.mxu0 0.0
    %1267 = vmatprep.subr.mxu0 0.0
    %1268 = vmatpush1.xpose.msra.mxu0 0.0
    %1269 = vmatprep.subr.mxu0 0.0
    %1270 = vmatpush1.xpose.msra.mxu0 0.0
    %1271 = vmatprep.subr.mxu0 0.0
    %1272 = vmatpush1.xpose.msra.mxu0 0.0
    %1273 = vmatprep.subr.mxu0 0.0
    %1274 = vmatpush1.xpose.msra.mxu0 0.0
    %1275 = vmatprep.subr.mxu0 0.0
    %1276 = vmatpush1.xpose.msra.mxu0 0.0
    %1277 = vmatprep.subr.mxu0 0.0
    %1278 = vmatpush1.xpose.msra.mxu0 0.0
    %1279 = vmatprep.subr.mxu0 0.0
    %1280 = vmatpush1.xpose.msra.mxu0 0.0
    %1281 = vmatprep.subr.mxu0 0.0
    %1282 = vmatpush1.xpose.msra.mxu0 0.0
    %1283 = vmatprep.subr.mxu0 0.0
    %1284 = vmatpush1.xpose.msra.mxu0 0.0
    %1285 = vmatprep.subr.mxu0 0.0
    %1286 = vmatpush1.xpose.msra.mxu0 0.0
    %1287 = vmatprep.subr.mxu0 0.0
    %1288 = vmatpush1.xpose.msra.mxu0 0.0
    %1289 = vmatprep.subr.mxu0 0.0
    %1290 = vmatpush1.xpose.msra.mxu0 0.0
    %1291 = vmatprep.subr.mxu0 0.0
    %1292 = vmatpush1.xpose.msra.mxu0 0.0
    %1293 = vmatprep.subr.mxu0 0.0
    %1294 = vmatpush1.xpose.msra.mxu0 0.0
    %1295 = vmatprep.subr.mxu0 0.0
    %1296 = vmatpush1.xpose.msra.mxu0 0.0
    %1297 = vmatprep.subr.mxu0 0.0
    %1298 = vmatpush1.xpose.msra.mxu0 0.0
    %1299 = vmatprep.subr.mxu0 0.0
    %1300 = vmatpush1.xpose.msra.mxu0 0.0
    %1301 = vmatprep.subr.mxu0 0.0
    %1302 = vmatpush1.xpose.msra.mxu0 0.0
    %1303 = vmatprep.subr.mxu0 0.0
    %1304 = vmatpush1.xpose.msra.mxu0 0.0
    %1305 = vmatprep.mubr.f32.mxu0 0.0
    %1306 = vmatmul.mubr.f32.gmra.mrb[0].mxu0 %v1237
    %v1307 = vpop.f32.mrb[0].mxu0
    %v1308 = vadd.f32 %v161, %v1307
    %v1309 = vpop.f32.mrb[0].mxu0
    %1310 = vdwg.mxu0
    %v1311 = vsel %vm167, %v1230, -inf
    %1312 = vmax.xlane.f32.xlu0 %v1311
    %v1313 = vpop.xlane.xlu0 %1312
    %v1314 = vsel %vm167, %v1308, -inf
    %1315 = vmax.xlane.f32.xlu0 %v1314
    %v1316 = vpop.xlane.xlu0 %1315
    %v1317 = vsub.f32 %v1230, %v1313
    %v1318 = vsub.f32 %v1308, %v1316
    %v1319 = vmul.f32 %v1317, 1.442695
    %v1320 = vpow.pop %v1319
    %v1321 = vmul.f32 %v1318, 1.442695
    %v1322 = vpow.pop %v1321
    %v1323 = vsel %vm167, %v1320, 0.0
    %1324 = vadd.xlane.f32.xlu0 %v1323
    %v1325 = vpop.xlane.xlu0 %1324
    %v1326 = vsel %vm167, %v1322, 0.0
    %1327 = vadd.xlane.f32.xlu0 %v1326
    %v1328 = vpop.xlane.xlu0 %1327
    %v1329 = vrcp.pop %v1325
    %v1330 = vrcp.pop %v1328
    %v1331 = vmul.f32 %v1320, %v1329
    %v1332 = vmul.f32 %v1322, %v1330
    %1333 = vrot.lane.b32.xlu0 %v120, 40
    %v1334 = vpop.permute.xlu0 %1333
    %v1337 = vsel %vm167, %v1331, 0
    %1339 = vmatprep.subr.mxu0 0.0
    %1340 = vmatpush1.msra.mxu0 %v1334
    %1341 = vmatprep.subr.mxu0 0.0
    %1342 = vmatpush1.msra.mxu0 0.0
    %1343 = vmatprep.subr.mxu0 0.0
    %1344 = vmatpush1.msra.mxu0 0.0
    %1345 = vmatprep.subr.mxu0 0.0
    %1346 = vmatpush1.msra.mxu0 0.0
    %1347 = vmatprep.subr.mxu0 0.0
    %1348 = vmatpush1.msra.mxu0 0.0
    %1349 = vmatprep.subr.mxu0 0.0
    %1350 = vmatpush1.msra.mxu0 0.0
    %1351 = vmatprep.subr.mxu0 0.0
    %1352 = vmatpush1.msra.mxu0 0.0
    %1353 = vmatprep.subr.mxu0 0.0
    %1354 = vmatpush1.msra.mxu0 0.0
    %1355 = vmatprep.subr.mxu0 0.0
    %1356 = vmatpush1.msra.mxu0 0.0
    %1357 = vmatprep.subr.mxu0 0.0
    %1358 = vmatpush1.msra.mxu0 0.0
    %1359 = vmatprep.subr.mxu0 0.0
    %1360 = vmatpush1.msra.mxu0 0.0
    %1361 = vmatprep.subr.mxu0 0.0
    %1362 = vmatpush1.msra.mxu0 0.0
    %1363 = vmatprep.subr.mxu0 0.0
    %1364 = vmatpush1.msra.mxu0 0.0
    %1365 = vmatprep.subr.mxu0 0.0
    %1366 = vmatpush1.msra.mxu0 0.0
    %1367 = vmatprep.subr.mxu0 0.0
    %1368 = vmatpush1.msra.mxu0 0.0
    %1369 = vmatprep.subr.mxu0 0.0
    %1370 = vmatpush1.msra.mxu0 0.0
    %1371 = vmatprep.subr.mxu0 0.0
    %1372 = vmatpush1.msra.mxu0 0.0
    %1373 = vmatprep.subr.mxu0 0.0
    %1374 = vmatpush1.msra.mxu0 0.0
    %1375 = vmatprep.subr.mxu0 0.0
    %1376 = vmatpush1.msra.mxu0 0.0
    %1377 = vmatprep.subr.mxu0 0.0
    %1378 = vmatpush1.msra.mxu0 0.0
    %1379 = vmatprep.subr.mxu0 0.0
    %1380 = vmatpush1.msra.mxu0 0.0
    %1381 = vmatprep.subr.mxu0 0.0
    %1382 = vmatpush1.msra.mxu0 0.0
    %1383 = vmatprep.subr.mxu0 0.0
    %1384 = vmatpush1.msra.mxu0 0.0
    %1385 = vmatprep.subr.mxu0 0.0
    %1386 = vmatpush1.msra.mxu0 0.0
    %1387 = vmatprep.subr.mxu0 0.0
    %1388 = vmatpush1.msra.mxu0 0.0
    %1389 = vmatprep.subr.mxu0 0.0
    %1390 = vmatpush1.msra.mxu0 0.0
    %1391 = vmatprep.subr.mxu0 0.0
    %1392 = vmatpush1.msra.mxu0 0.0
    %1393 = vmatprep.subr.mxu0 0.0
    %1394 = vmatpush1.msra.mxu0 0.0
    %1395 = vmatprep.subr.mxu0 0.0
    %1396 = vmatpush1.msra.mxu0 0.0
    %1397 = vmatprep.subr.mxu0 0.0
    %1398 = vmatpush1.msra.mxu0 0.0
    %1399 = vmatprep.subr.mxu0 0.0
    %1400 = vmatpush1.msra.mxu0 0.0
    %1401 = vmatprep.subr.mxu0 0.0
    %1402 = vmatpush1.msra.mxu0 0.0
    %1403 = vmatprep.mubr.f32.mxu0 0.0
    %1404 = vmatmul.mubr.f32.gmra.mrb[0].mxu0 %v1337
    %v1405 = vpop.f32.mrb[0].mxu0
    %v1406 = vadd.f32 0.0, %v1405
    %v1407 = vpop.f32.mrb[0].mxu0
    %1408 = vdwg.mxu0
    %1409 = vrot.lane.b32.xlu0 %v125, 40
    %v1410 = vpop.permute.xlu0 %1409
    %v1413 = vsel %vm167, %v1332, 0
    %1415 = vmatprep.subr.mxu0 0.0
    %1416 = vmatpush1.msra.mxu0 %v1410
    %1417 = vmatprep.subr.mxu0 0.0
    %1418 = vmatpush1.msra.mxu0 0.0
    %1419 = vmatprep.subr.mxu0 0.0
    %1420 = vmatpush1.msra.mxu0 0.0
    %1421 = vmatprep.subr.mxu0 0.0
    %1422 = vmatpush1.msra.mxu0 0.0
    %1423 = vmatprep.subr.mxu0 0.0
    %1424 = vmatpush1.msra.mxu0 0.0
    %1425 = vmatprep.subr.mxu0 0.0
    %1426 = vmatpush1.msra.mxu0 0.0
    %1427 = vmatprep.subr.mxu0 0.0
    %1428 = vmatpush1.msra.mxu0 0.0
    %1429 = vmatprep.subr.mxu0 0.0
    %1430 = vmatpush1.msra.mxu0 0.0
    %1431 = vmatprep.subr.mxu0 0.0
    %1432 = vmatpush1.msra.mxu0 0.0
    %1433 = vmatprep.subr.mxu0 0.0
    %1434 = vmatpush1.msra.mxu0 0.0
    %1435 = vmatprep.subr.mxu0 0.0
    %1436 = vmatpush1.msra.mxu0 0.0
    %1437 = vmatprep.subr.mxu0 0.0
    %1438 = vmatpush1.msra.mxu0 0.0
    %1439 = vmatprep.subr.mxu0 0.0
    %1440 = vmatpush1.msra.mxu0 0.0
    %1441 = vmatprep.subr.mxu0 0.0
    %1442 = vmatpush1.msra.mxu0 0.0
    %1443 = vmatprep.subr.mxu0 0.0
    %1444 = vmatpush1.msra.mxu0 0.0
    %1445 = vmatprep.subr.mxu0 0.0
    %1446 = vmatpush1.msra.mxu0 0.0
    %1447 = vmatprep.subr.mxu0 0.0
    %1448 = vmatpush1.msra.mxu0 0.0
    %1449 = vmatprep.subr.mxu0 0.0
    %1450 = vmatpush1.msra.mxu0 0.0
    %1451 = vmatprep.subr.mxu0 0.0
    %1452 = vmatpush1.msra.mxu0 0.0
    %1453 = vmatprep.subr.mxu0 0.0
    %1454 = vmatpush1.msra.mxu0 0.0
    %1455 = vmatprep.subr.mxu0 0.0
    %1456 = vmatpush1.msra.mxu0 0.0
    %1457 = vmatprep.subr.mxu0 0.0
    %1458 = vmatpush1.msra.mxu0 0.0
    %1459 = vmatprep.subr.mxu0 0.0
    %1460 = vmatpush1.msra.mxu0 0.0
    %1461 = vmatprep.subr.mxu0 0.0
    %1462 = vmatpush1.msra.mxu0 0.0
    %1463 = vmatprep.subr.mxu0 0.0
    %1464 = vmatpush1.msra.mxu0 0.0
    %1465 = vmatprep.subr.mxu0 0.0
    %1466 = vmatpush1.msra.mxu0 0.0
    %1467 = vmatprep.subr.mxu0 0.0
    %1468 = vmatpush1.msra.mxu0 0.0
    %1469 = vmatprep.subr.mxu0 0.0
    %1470 = vmatpush1.msra.mxu0 0.0
    %1471 = vmatprep.subr.mxu0 0.0
    %1472 = vmatpush1.msra.mxu0 0.0
    %1473 = vmatprep.subr.mxu0 0.0
    %1474 = vmatpush1.msra.mxu0 0.0
    %1475 = vmatprep.subr.mxu0 0.0
    %1476 = vmatpush1.msra.mxu0 0.0
    %1477 = vmatprep.subr.mxu0 0.0
    %1478 = vmatpush1.msra.mxu0 0.0
    %1479 = vmatprep.mubr.f32.mxu0 0.0
    %1480 = vmatmul.mubr.f32.gmra.mrb[0].mxu0 %v1413
    %v1481 = vpop.f32.mrb[0].mxu0
    %v1482 = vadd.f32 0.0, %v1481
    %v1483 = vpop.f32.mrb[0].mxu0
    %1484 = vdwg.mxu0
    %1485 = vst.msk [vmem:[#allocation4] sm:$0xff] %vm167, %v341
    %1486 = vst.msk [vmem:[#allocation4 + $0x8] sm:$0xff] %vm167, %v671
    %1487 = vst.msk [vmem:[#allocation4 + $0x10] sm:$0xff] %vm167, %v1001
    %1488 = vst.msk [vmem:[#allocation4 + $0x18] sm:$0xff] %vm167, %v1331
    %1489 = vst.msk [vmem:[#allocation4 + $0x20] sm:$0xff] %vm167, %v342
    %1490 = vst.msk [vmem:[#allocation4 + $0x28] sm:$0xff] %vm167, %v672
    %1491 = vst.msk [vmem:[#allocation4 + $0x30] sm:$0xff] %vm167, %v1002
    %1492 = vst.msk [vmem:[#allocation4 + $0x38] sm:$0xff] %vm167, %v1332
    %1495 = vrot.lane.b32.xlu0 %v746, 8
    %v1496 = vpop.permute.xlu0 %1495
    %1497 = vrot.lane.b32.xlu0 %v822, 8
    %v1498 = vpop.permute.xlu0 %1497
    %1503 = vrot.lane.b32.xlu0 %v1076, 16
    %v1504 = vpop.permute.xlu0 %1503
    %1505 = vrot.lane.b32.xlu0 %v1152, 16
    %v1506 = vpop.permute.xlu0 %1505
    %1511 = vrot.lane.b32.xlu0 %v1406, 24
    %v1512 = vpop.permute.xlu0 %1511
    %1513 = vrot.lane.b32.xlu0 %v1482, 24
    %v1514 = vpop.permute.xlu0 %1513
    %v1517 = vsel %vm167, %v416, %v1496
    %v1518 = vsel %vm167, %v492, %v1498
    %vm1519 = vcmask 130048
    %v1520 = vsel %vm1519, %v1517, %v1504
    %v1521 = vsel %vm1519, %v1518, %v1506
    %vm1522 = vcmask 195584
    %v1523 = vsel %vm1522, %v1520, %v1512
    %v1524 = vsel %vm1522, %v1521, %v1514
    %v1525 = vld [vmem:[%s4] sm:$0xff]
    %v1526 = vld [vmem:[%s4 + $0x8] sm:$0xff]
    %v1527 = vld [vmem:[%s4 + $0x10] sm:$0xff]
    %v1528 = vld [vmem:[%s4 + $0x18] sm:$0xff]
    %v1529 = vld [vmem:[%s5] sm:$0x1]
    %v1531 = vlaneseq
    %v1532 = vshrl.u32 %v1531, 7
    %v1533 = vsub.s32 0, %v1532
    %v1534 = vrot.slane %v1529, %v1533
    %v1537 = vsel %vm46, %v1523, 0
    %v1540 = vsel %vm46, %v1524, 0
    %1542 = vmatprep.subr.mxu0 0.0
    %1543 = vmatpush1.msra.mxu0 %v1525
    %1544 = vmatprep.subr.mxu0 0.0
    %1545 = vmatpush1.msra.mxu0 %v1526
    %1546 = vmatprep.subr.mxu0 0.0
    %1547 = vmatpush1.msra.mxu0 %v1527
    %1548 = vmatprep.subr.mxu0 0.0
    %1549 = vmatpush1.msra.mxu0 %v1528
    %1550 = vmatprep.subr.mxu0 0.0
    %1551 = vmatpush1.msra.mxu0 0.0
    %1552 = vmatprep.subr.mxu0 0.0
    %1553 = vmatpush1.msra.mxu0 0.0
    %1554 = vmatprep.subr.mxu0 0.0
    %1555 = vmatpush1.msra.mxu0 0.0
    %1556 = vmatprep.subr.mxu0 0.0
    %1557 = vmatpush1.msra.mxu0 0.0
    %1558 = vmatprep.subr.mxu0 0.0
    %1559 = vmatpush1.msra.mxu0 0.0
    %1560 = vmatprep.subr.mxu0 0.0
    %1561 = vmatpush1.msra.mxu0 0.0
    %1562 = vmatprep.subr.mxu0 0.0
    %1563 = vmatpush1.msra.mxu0 0.0
    %1564 = vmatprep.subr.mxu0 0.0
    %1565 = vmatpush1.msra.mxu0 0.0
    %1566 = vmatprep.subr.mxu0 0.0
    %1567 = vmatpush1.msra.mxu0 0.0
    %1568 = vmatprep.subr.mxu0 0.0
    %1569 = vmatpush1.msra.mxu0 0.0
    %1570 = vmatprep.subr.mxu0 0.0
    %1571 = vmatpush1.msra.mxu0 0.0
    %1572 = vmatprep.subr.mxu0 0.0
    %1573 = vmatpush1.msra.mxu0 0.0
    %1574 = vmatprep.subr.mxu0 0.0
    %1575 = vmatpush1.msra.mxu0 0.0
    %1576 = vmatprep.subr.mxu0 0.0
    %1577 = vmatpush1.msra.mxu0 0.0
    %1578 = vmatprep.subr.mxu0 0.0
    %1579 = vmatpush1.msra.mxu0 0.0
    %1580 = vmatprep.subr.mxu0 0.0
    %1581 = vmatpush1.msra.mxu0 0.0
    %1582 = vmatprep.subr.mxu0 0.0
    %1583 = vmatpush1.msra.mxu0 0.0
    %1584 = vmatprep.subr.mxu0 0.0
    %1585 = vmatpush1.msra.mxu0 0.0
    %1586 = vmatprep.subr.mxu0 0.0
    %1587 = vmatpush1.msra.mxu0 0.0
    %1588 = vmatprep.subr.mxu0 0.0
    %1589 = vmatpush1.msra.mxu0 0.0
    %1590 = vmatprep.subr.mxu0 0.0
    %1591 = vmatpush1.msra.mxu0 0.0
    %1592 = vmatprep.subr.mxu0 0.0
    %1593 = vmatpush1.msra.mxu0 0.0
    %1594 = vmatprep.subr.mxu0 0.0
    %1595 = vmatpush1.msra.mxu0 0.0
    %1596 = vmatprep.subr.mxu0 0.0
    %1597 = vmatpush1.msra.mxu0 0.0
    %1598 = vmatprep.subr.mxu0 0.0
    %1599 = vmatpush1.msra.mxu0 0.0
    %1600 = vmatprep.subr.mxu0 0.0
    %1601 = vmatpush1.msra.mxu0 0.0
    %1602 = vmatprep.subr.mxu0 0.0
    %1603 = vmatpush1.msra.mxu0 0.0
    %1604 = vmatprep.subr.mxu0 0.0
    %1605 = vmatpush1.msra.mxu0 0.0
    %1606 = vmatprep.mubr.f32.mxu0 0.0
    %1607 = vmatmul.mubr.f32.gmra.mrb[0].mxu0 %v1537
    %v1608 = vpop.f32.mrb[0].mxu0
    %v1609 = vadd.f32 %v1534, %v1608
    %v1610 = vpop.f32.mrb[0].mxu0
    %1611 = vmatprep.mubr.f32.mxu0 0.0
    %1612 = vmatmul.mubr.f32.gmra.mrb[0].mxu0 %v1540
    %v1613 = vpop.f32.mrb[0].mxu0
    %v1614 = vadd.f32 %v1534, %v1613
    %v1615 = vpop.f32.mrb[0].mxu0
    %1616 = vdwg.mxu0
    %v1617 = vadd.f32 %v1609, %v33
    %v1618 = vadd.f32 %v1614, %v34
    %v1619 = vsel %vm46, %v1617, 0.0
    %1620 = vadd.xlane.f32.xlu0 %v1619
    %v1621 = vpop.xlane.xlu0 %1620
    %v1622 = vsel %vm46, %v1618, 0.0
    %1623 = vadd.xlane.f32.xlu0 %v1622
    %v1624 = vpop.xlane.xlu0 %1623
    %v1625 = vrcp.pop 32.0
    %v1626 = vmul.f32 %v1621, %v1625
    %v1627 = vmul.f32 %v1624, %v1625
    %v1628 = vsub.f32 %v1617, %v1626
    %v1629 = vsub.f32 %v1618, %v1627
    %v1630 = vmul.f32 %v1628, %v1628
    %v1631 = vmul.f32 %v1629, %v1629
    %v1632 = vsel %vm46, %v1630, 0.0
    %1633 = vadd.xlane.f32.xlu0 %v1632
    %v1634 = vpop.xlane.xlu0 %1633
    %v1635 = vsel %vm46, %v1631, 0.0
    %1636 = vadd.xlane.f32.xlu0 %v1635
    %v1637 = vpop.xlane.xlu0 %1636
    %v1638 = vmul.f32 %v1634, %v1625
    %v1639 = vmul.f32 %v1637, %v1625
    %v1640 = vadd.f32 %v1638, 1e-12
    %v1641 = vadd.f32 %v1639, 1e-12
    %v1642 = vrsqrt.pop %v1640
    %v1643 = vrsqrt.pop %v1641
    %v1644 = vmul.f32 %v1628, %v1642
    %v1645 = vmul.f32 %v1629, %v1643
    %v1646 = vld [vmem:[%s6] sm:$0x1]
    %v1648 = vlaneseq
    %v1649 = vshrl.u32 %v1648, 7
    %v1650 = vsub.s32 0, %v1649
    %v1651 = vrot.slane %v1646, %v1650
    %v1653 = vmul.f32 %v1644, %v1651
    %v1654 = vmul.f32 %v1645, %v1651
    %v1655 = vld [vmem:[%s7] sm:$0x1]
    %v1657 = vlaneseq
    %v1658 = vshrl.u32 %v1657, 7
    %v1659 = vsub.s32 0, %v1658
    %v1660 = vrot.slane %v1655, %v1659
    %v1662 = vadd.f32 %v1653, %v1660
    %v1663 = vadd.f32 %v1654, %v1660
    %1664 = vst.msk [vmem:[#allocation2] sm:$0xff] %vm46, %v1662
    %1665 = vst.msk [vmem:[#allocation2 + $0x8] sm:$0xff] %vm46, %v1663
    // Predicated region
    $region34: #{bert_attention.1} parent=1 // pred_check
      _
    $region35: #{bert_attention.1} parent=1 // pred_check_branch
      %1667 = sbr.rel (0) target = $region37
    $region36: #{bert_attention.1} parent=1 // pred_region
      %s1669 = ssub.s32 256, 256
      %1670 = vsyncadd [#allocation3], %s1669
      %s1671 = sshll.u32 [#allocation2], 4
      %s1672 = int_to_ptr.vmem [resolvable:$true] %s1671
      %1677 = dma.vmem_to_hbm [thread:$0]  %s1672, 256, %s8, [#allocation3], 128, 128, 8
    $region37: #{bert_attention.1} parent=1 // pred_fallthru
      _
    // Predicated region
    $region38: #{bert_attention.1} parent=1 // pred_check
      _
    $region39: #{bert_attention.1} parent=1 // pred_check_branch
      %1679 = sbr.rel (0) target = $region41
    $region40: #{bert_attention.1} parent=1 // pred_region
      %s1681 = ssub.s32 1024, 1024
      %1682 = vsyncadd [#allocation5], %s1681
      %s1683 = sshll.u32 [#allocation4], 4
      %s1684 = int_to_ptr.vmem [resolvable:$true] %s1683
      %1689 = dma.vmem_to_hbm [thread:$0]  %s1684, 1024, %s9, [#allocation5], 128, 128, 8
    $region41: #{bert_attention.1} parent=1 // pred_fallthru
      _
    // Predicated region
    $region42: #{bert_attention.1} parent=1 // pred_check
      _
    $region43: #{bert_attention.1} parent=1 // pred_check_branch
      %1691 = sbr.rel (0) target = $region45
    $region44: #{bert_attention.1} parent=1 // pred_region
      %1692 = dma.done [#allocation3], 256
    $region45: #{bert_attention.1} parent=1 // pred_fallthru
      _
    // Predicated region
    $region46: #{bert_attention.1} parent=1 // pred_check
      _
    $region47: #{bert_attention.1} parent=1 // pred_check_branch
      %1694 = sbr.rel (0) target = $region49
    $region48: #{bert_attention.1} parent=1 // pred_region
      %1695 = dma.done [#allocation5], 1024
    $region49: #{bert_attention.1} parent=1 // pred_fallthru
      _
    %1696 = vsyncpa [#allocation3], 1
    %1697 = vsyncpa [#allocation5], 1

</llo_original>
